<compile_context>
chip_gen: v6e
topology: v6e:2x2x1
jax: 0.10.0
libtpu: 0.0.40
codegen_flags: <defaults>
</compile_context>

<pallas_src>
import functools

import jax
import jax.numpy as jnp
from jax.experimental import pallas as pl
from jax.experimental.pallas import tpu as pltpu


def _round_up(v, m):
    return (v + m - 1) // m * m


def tgcn_kernel(x2d_ref, wih_ref, bih_ref, whh_ref, bhhn_ref,
                wdec_ref, bdec_ref, wfc_ref, bfc_ref, pred_ref,
                gx_ref, hall_ref,
                *, batch_p, seq_len, pre_len, hp):
    Bp = batch_p
    Hp = hp
    bf16 = jnp.bfloat16

    whh = whh_ref[...]      # (Hp, 3Hp)  bf16
    wdec = wdec_ref[...]    # (Hp, 6Hp)  bf16 = [wfcT @ wihT | whhT], gate-aligned

    # Hoisted bias broadcasts reused every step (JAX does not CSE broadcast_in_dim).
    bhhn_b = jnp.broadcast_to(bhhn_ref[...], (Bp, Hp))       # hidden bias, n-gate only
    bdec_b = jnp.broadcast_to(bdec_ref[...], (Bp, 3 * Hp))   # decode input-side bias

    def gates(gx, gh, h):
        # PyTorch GRUCell gate order (r, z, n); slices are 128-lane aligned.
        # r/z halves of b_hh were pre-folded into the input-side bias.
        r = jax.nn.sigmoid(gx[:, 0 * Hp:1 * Hp] + gh[:, 0 * Hp:1 * Hp])
        z = jax.nn.sigmoid(gx[:, 1 * Hp:2 * Hp] + gh[:, 1 * Hp:2 * Hp])
        n = jnp.tanh(gx[:, 2 * Hp:3 * Hp] + r * (gh[:, 2 * Hp:3 * Hp] + bhhn_b))
        return (1.0 - z) * n + z * h

    # ---- Encode: all input projections in ONE bf16 GEMM (off the serial
    # critical path), staged in VMEM scratch so only one (Bp, 3Hp) tile is
    # live per step.  Bias broadcast fuses into the add (used once).
    gx_ref[...] = (jnp.dot(x2d_ref[...], wih_ref[...],
                           preferred_element_type=jnp.float32)
                   + bih_ref[...])

    def enc_step(t, h):
        start = pl.multiple_of(t * Bp, Bp)
        gx_t = gx_ref[pl.ds(start, Bp), :]
        gh = jnp.dot(h.astype(bf16), whh, preferred_element_type=jnp.float32)
        return gates(gx_t, gh, h)

    h = jax.lax.fori_loop(0, seq_len, enc_step,
                          jnp.zeros((Bp, Hp), jnp.float32), unroll=True)
    hall_ref[pl.ds(0, Bp), :] = h

    # ---- Decode: fc folded into the GRU input projection -> a single
    # (Bp, Hp) @ (Hp, 6Hp) bf16 matmul per step on the critical path.
    def dec_step(p, h):
        g = jnp.dot(h.astype(bf16), wdec, preferred_element_type=jnp.float32)
        h = gates(g[:, :3 * Hp] + bdec_b, g[:, 3 * Hp:], h)
        start = pl.multiple_of(p * Bp, Bp)
        hall_ref[pl.ds(start, Bp), :] = h
        return h

    if pre_len > 1:
        jax.lax.fori_loop(1, pre_len, dec_step, h, unroll=True)

    # ---- Deferred fc for every prediction step: one GEMM + one lane-dense
    # unmasked (pre_len*Bp, Ip) store.
    pred_ref[...] = (jnp.dot(hall_ref[...].astype(bf16), wfc_ref[...],
                             preferred_element_type=jnp.float32)
                     + bfc_ref[...])


def tgcn_forward(x, params, *, hidden_size, pre_len):
    """x: (B, T, I) float32.  Returns pred: (B, pre_len, I) float32."""
    B, T, I = x.shape
    H = hidden_size
    Bp = _round_up(B, 8)       # sublane-aligned batch
    Hp = _round_up(H, 128)     # gate-aligned hidden: gate slices at lanes 0/Hp/2Hp
    Ip = _round_up(I, 128)     # lane-dense output width

    f32, bf16 = jnp.float32, jnp.bfloat16
    w_ih = params["w_ih"].astype(f32)   # (3H, I)
    w_hh = params["w_hh"].astype(f32)   # (3H, H)
    b_ih = params["b_ih"].astype(f32)   # (3H,)
    b_hh = params["b_hh"].astype(f32)   # (3H,)
    w_fc = params["w_fc"].astype(f32)   # (I, H)
    b_fc = params["b_fc"].astype(f32)   # (I,)

    # Pad each gate block H -> Hp with zeros (keeps padded h lanes exactly 0).
    def pad_gate_cols(w_t):  # (*, 3H) -> (*, 3Hp)
        blocks = jnp.split(w_t, 3, axis=-1)
        blocks = [jnp.pad(blk, ((0, 0), (0, Hp - H))) for blk in blocks]
        return jnp.concatenate(blocks, axis=-1)

    wih_p = pad_gate_cols(w_ih.T)                                    # (I, 3Hp)
    whh_p = pad_gate_cols(jnp.pad(w_hh.T, ((0, Hp - H), (0, 0))))    # (Hp, 3Hp)
    bih_p = pad_gate_cols(b_ih[None, :])                             # (1, 3Hp)
    bhh_p = pad_gate_cols(b_hh[None, :])                             # (1, 3Hp)
    wfc_h = jnp.pad(w_fc.T, ((0, Hp - H), (0, 0)))                   # (Hp, I)

    # Fold r/z halves of b_hh into the input-side bias (in-loop hidden bias add
    # then only covers the n-gate slice).
    bhh_rz0 = bhh_p.at[:, 2 * Hp:].set(0.0)
    bih_fold = bih_p + bhh_rz0                                       # (1, 3Hp)
    bhh_n = bhh_p[:, 2 * Hp:3 * Hp]                                  # (1, Hp)

    # Decode folding: gru input is out = h @ wfc_h + bfc, so its input
    # projection is h @ (wfc_h @ wih_p) + (bfc @ wih_p + bih_fold).  Stack with
    # the hidden projection -> single matmul per decode step.
    w_dec = jnp.concatenate([wfc_h @ wih_p, whh_p], axis=1)          # (Hp, 6Hp)
    b_dec = b_fc[None, :] @ wih_p + bih_fold                         # (1, 3Hp)

    # Lane-dense fc weights for the deferred output GEMM.
    wfc_out = jnp.pad(wfc_h, ((0, 0), (0, Ip - I)))                  # (Hp, Ip)
    bfc_out = jnp.pad(b_fc[None, :], ((0, 0), (0, Ip - I)))          # (1, Ip)

    # (B, T, I) -> pad batch to Bp -> (T*Bp, I): one encode-projection GEMM,
    # contiguous sublane-aligned per-t row blocks.
    x_pad = jnp.pad(x.astype(f32), ((0, Bp - B), (0, 0), (0, 0)))
    x2d = jnp.transpose(x_pad, (1, 0, 2)).reshape(T * Bp, I)

    # bf16 operands for every MXU matmul (f32 accumulate inside the kernel).
    x2d_b, wih_b, whh_b = x2d.astype(bf16), wih_p.astype(bf16), whh_p.astype(bf16)
    wdec_b, wfc_b = w_dec.astype(bf16), wfc_out.astype(bf16)

    flops = (2 * T * Bp * I * 3 * Hp                 # gx_all GEMM
             + T * 2 * Bp * Hp * 3 * Hp              # encode gh matmuls
             + (pre_len - 1) * 2 * Bp * Hp * 6 * Hp  # fused decode matmuls
             + 2 * pre_len * Bp * Hp * Ip)           # deferred fc
    resident_bytes = (x2d_b.size * 2 + wih_b.size * 2 + whh_b.size * 2
                      + wdec_b.size * 2 + wfc_b.size * 2
                      + (bih_fold.size + bhh_n.size + b_dec.size + bfc_out.size) * 4
                      + T * Bp * 3 * Hp * 4          # gx scratch
                      + pre_len * Bp * Hp * 4        # h_all scratch
                      + pre_len * Bp * Ip * 4)       # output
    cost = pl.CostEstimate(
        flops=int(flops),
        transcendentals=int((T + pre_len - 1) * Bp * 5 * H),  # 2 sigmoid + 1 tanh
        bytes_accessed=int(resident_bytes),
    )

    kernel = functools.partial(tgcn_kernel, batch_p=Bp, seq_len=T,
                               pre_len=pre_len, hp=Hp)
    vmem = pl.BlockSpec(memory_space=pltpu.MemorySpace.VMEM)
    vmem_limit = int(min(64 * 1024 * 1024,
                         max(8 * 1024 * 1024, 2 * resident_bytes)))

    pred2d = pl.pallas_call(
        kernel,
        out_shape=jax.ShapeDtypeStruct((pre_len * Bp, Ip), f32),
        in_specs=[vmem] * 9,
        out_specs=vmem,
        scratch_shapes=[pltpu.VMEM((T * Bp, 3 * Hp), f32),       # staged gx_all
                        pltpu.VMEM((pre_len * Bp, Hp), f32)],     # staged h per step
        compiler_params=pltpu.CompilerParams(vmem_limit_bytes=vmem_limit),
        cost_estimate=cost,
    )(x2d_b, wih_b, bih_fold, whh_b, bhh_n, wdec_b, b_dec, wfc_b, bfc_out)

    # Wrapper-side layout plumbing: slice padded batch/feature lanes and put
    # the prediction axis second: (pre_len*Bp, Ip) -> (B, pre_len, I).
    pred = pred2d.reshape(pre_len, Bp, Ip)[:, :B, :I]
    return jnp.transpose(pred, (1, 0, 2))


def tgcn_reference(x, params, *, hidden_size, pre_len):
    """Pure-JAX f32 reference matching the PyTorch forward exactly."""
    B, T, I = x.shape
    H = hidden_size
    wih, whh = params["w_ih"], params["w_hh"]
    bih, bhh = params["b_ih"], params["b_hh"]
    wfc, bfc = params["w_fc"], params["b_fc"]

    def gru(xt, h):
        gx = xt @ wih.T + bih
        gh = h @ whh.T + bhh
        r = jax.nn.sigmoid(gx[:, :H] + gh[:, :H])
        z = jax.nn.sigmoid(gx[:, H:2 * H] + gh[:, H:2 * H])
        n = jnp.tanh(gx[:, 2 * H:] + r * gh[:, 2 * H:])
        return (1.0 - z) * n + z * h

    h = jnp.zeros((B, H), jnp.float32)
    for t in range(T):
        h = gru(x[:, t, :], h)
    out = h @ wfc.T + bfc
    preds = [out]
    for _ in range(1, pre_len):
        h = gru(out, h)
        out = h @ wfc.T + bfc
        preds.append(out)
    return jnp.stack(preds, axis=1)


def init_params(key, input_size, hidden_size):
    """Deterministic init matching PyTorch's default U(-1/sqrt(H), 1/sqrt(H))."""
    ks = jax.random.split(key, 6)
    bound = 1.0 / (hidden_size ** 0.5)
    u = lambda k, shape: jax.random.uniform(k, shape, jnp.float32, -bound, bound)
    return {
        "w_ih": u(ks[0], (3 * hidden_size, input_size)),
        "w_hh": u(ks[1], (3 * hidden_size, hidden_size)),
        "b_ih": u(ks[2], (3 * hidden_size,)),
        "b_hh": u(ks[3], (3 * hidden_size,)),
        "w_fc": u(ks[4], (input_size, hidden_size)),
        "b_fc": u(ks[5], (input_size,)),
    }


if __name__ == "__main__":
    B, T, I, H, P = 2, 8, 8, 32, 4   # batch, seq_len, input_size, hidden_size, pre_len

    key = jax.random.PRNGKey(0)
    kx, kp = jax.random.split(key)
    x = jax.random.normal(kx, (B, T, I), dtype=jnp.float32)
    params = init_params(kp, I, H)

    pred = tgcn_forward(x, params, hidden_size=H, pre_len=P)
    pred = jax.block_until_ready(pred)

    ref = tgcn_reference(x, params, hidden_size=H, pre_len=P)
    assert pred.shape == (B, P, I)
    # bf16 MXU operands (f32 accumulate) introduce small rounding drift over the
    # T + pre_len - 1 serial recurrence steps vs the f32 reference.
    assert jnp.allclose(pred, ref, atol=3e-2, rtol=3e-2), (
        "mismatch vs reference, max abs diff = "
        f"{float(jnp.max(jnp.abs(pred - ref)))}")

    print("KERNEL_OK")
</pallas_src>

<mosaic_0001>
module attributes {stable_mosaic.version = 11 : i64} {
  func.func @tgcn_kernel(%arg0: memref<64x8xbf16, #tpu.memory_space<vmem>>, %arg1: memref<8x384xbf16, #tpu.memory_space<vmem>>, %arg2: memref<1x384xf32, #tpu.memory_space<vmem>>, %arg3: memref<128x384xbf16, #tpu.memory_space<vmem>>, %arg4: memref<1x128xf32, #tpu.memory_space<vmem>>, %arg5: memref<128x768xbf16, #tpu.memory_space<vmem>>, %arg6: memref<1x384xf32, #tpu.memory_space<vmem>>, %arg7: memref<128x128xbf16, #tpu.memory_space<vmem>>, %arg8: memref<1x128xf32, #tpu.memory_space<vmem>>, %arg9: memref<32x128xf32, #tpu.memory_space<vmem>>, %arg10: memref<64x384xf32, #tpu.memory_space<vmem>>, %arg11: memref<32x128xf32, #tpu.memory_space<vmem>>) attributes {dimension_semantics = [], scalar_prefetch = 0 : i64, scratch_operands = 2 : i64, tpu.core_type = #tpu.core_type<tc>} {
    %c0 = arith.constant 0 : index
    %c0_0 = arith.constant 0 : index
    %0 = vector.load %arg3[%c0, %c0_0] : memref<128x384xbf16, #tpu.memory_space<vmem>>, vector<128x384xbf16>
    %c0_1 = arith.constant 0 : index
    %c0_2 = arith.constant 0 : index
    %1 = vector.load %arg5[%c0_1, %c0_2] : memref<128x768xbf16, #tpu.memory_space<vmem>>, vector<128x768xbf16>
    %c0_3 = arith.constant 0 : index
    %c0_4 = arith.constant 0 : index
    %2 = vector.load %arg4[%c0_3, %c0_4] : memref<1x128xf32, #tpu.memory_space<vmem>>, vector<1x128xf32>
    %3 = vector.shape_cast %2 : vector<1x128xf32> to vector<1x128xf32>
    %4 = vector.broadcast %3 : vector<1x128xf32> to vector<8x128xf32>
    %c0_5 = arith.constant 0 : index
    %c0_6 = arith.constant 0 : index
    %5 = vector.load %arg6[%c0_5, %c0_6] : memref<1x384xf32, #tpu.memory_space<vmem>>, vector<1x384xf32>
    %6 = vector.shape_cast %5 : vector<1x384xf32> to vector<1x384xf32>
    %7 = vector.broadcast %6 : vector<1x384xf32> to vector<8x384xf32>
    %c0_7 = arith.constant 0 : index
    %c0_8 = arith.constant 0 : index
    %8 = vector.load %arg0[%c0_7, %c0_8] : memref<64x8xbf16, #tpu.memory_space<vmem>>, vector<64x8xbf16>
    %c0_9 = arith.constant 0 : index
    %c0_10 = arith.constant 0 : index
    %9 = vector.load %arg1[%c0_9, %c0_10] : memref<8x384xbf16, #tpu.memory_space<vmem>>, vector<8x384xbf16>
    %cst = arith.constant dense<0.000000e+00> : vector<64x384xf32>
    %10 = tpu.matmul %8, %9, %cst {dimension_numbers = #tpu.dot_dimension_numbers<[1], [0], [0], [1], [0, 0, 1, 1], [], []>} : vector<64x8xbf16>, vector<8x384xbf16>, vector<64x384xf32> -> vector<64x384xf32>
    %c0_11 = arith.constant 0 : index
    %c0_12 = arith.constant 0 : index
    %11 = vector.load %arg2[%c0_11, %c0_12] : memref<1x384xf32, #tpu.memory_space<vmem>>, vector<1x384xf32>
    %12 = vector.broadcast %11 : vector<1x384xf32> to vector<64x384xf32>
    %13 = arith.addf %10, %12 : vector<64x384xf32>
    %c0_13 = arith.constant 0 : index
    %c0_14 = arith.constant 0 : index
    %14 = vector.load %arg10[%c0_13, %c0_14] : memref<64x384xf32, #tpu.memory_space<vmem>>, vector<64x384xf32>
    tpu.vector_store %arg10[%c0_13, %c0_14], %13 {strides = array<i32>} : memref<64x384xf32, #tpu.memory_space<vmem>>, vector<64x384xf32>,
    %cst_15 = arith.constant 0.000000e+00 : f32
    %15 = vector.broadcast %cst_15 : f32 to vector<8x128xf32>
    %c0_i32 = arith.constant 0 : i32
    %c8_i32 = arith.constant 8 : i32
    %16 = arith.muli %c0_i32, %c8_i32 : i32
    %17 = tpu.assume_multiple %16, 8 : i32
    %18 = arith.index_cast %17 : i32 to index
    %c0_16 = arith.constant 0 : index
    %19 = vector.load %arg10[%18, %c0_16] : memref<64x384xf32, #tpu.memory_space<vmem>>, vector<8x384xf32>
    %20 = arith.truncf %15 : vector<8x128xf32> to vector<8x128xbf16>
    %cst_17 = arith.constant dense<0.000000e+00> : vector<8x384xf32>
    %21 = tpu.matmul %20, %0, %cst_17 {dimension_numbers = #tpu.dot_dimension_numbers<[1], [0], [0], [1], [0, 0, 1, 1], [], []>} : vector<8x128xbf16>, vector<128x384xbf16>, vector<8x384xf32> -> vector<8x384xf32>
    %22 = vector.extract_strided_slice %19 {offsets = [0, 0], sizes = [8, 128], strides = [1, 1]} : vector<8x384xf32> to vector<8x128xf32>
    %23 = vector.extract_strided_slice %21 {offsets = [0, 0], sizes = [8, 128], strides = [1, 1]} : vector<8x384xf32> to vector<8x128xf32>
    %24 = arith.addf %22, %23 : vector<8x128xf32>
    %25 = arith.negf %24 : vector<8x128xf32>
    %26 = math.exp %25 : vector<8x128xf32>
    %cst_18 = arith.constant 1.000000e+00 : f32
    %27 = vector.broadcast %cst_18 : f32 to vector<8x128xf32>
    %28 = arith.addf %27, %26 : vector<8x128xf32>
    %29 = arith.divf %27, %28 : vector<8x128xf32>
    %30 = vector.extract_strided_slice %19 {offsets = [0, 128], sizes = [8, 128], strides = [1, 1]} : vector<8x384xf32> to vector<8x128xf32>
    %31 = vector.extract_strided_slice %21 {offsets = [0, 128], sizes = [8, 128], strides = [1, 1]} : vector<8x384xf32> to vector<8x128xf32>
    %32 = arith.addf %30, %31 : vector<8x128xf32>
    %33 = arith.negf %32 : vector<8x128xf32>
    %34 = math.exp %33 : vector<8x128xf32>
    %cst_19 = arith.constant 1.000000e+00 : f32
    %35 = vector.broadcast %cst_19 : f32 to vector<8x128xf32>
    %36 = arith.addf %35, %34 : vector<8x128xf32>
    %37 = arith.divf %35, %36 : vector<8x128xf32>
    %38 = vector.extract_strided_slice %19 {offsets = [0, 256], sizes = [8, 128], strides = [1, 1]} : vector<8x384xf32> to vector<8x128xf32>
    %39 = vector.extract_strided_slice %21 {offsets = [0, 256], sizes = [8, 128], strides = [1, 1]} : vector<8x384xf32> to vector<8x128xf32>
    %40 = arith.addf %39, %4 : vector<8x128xf32>
    %41 = arith.mulf %29, %40 : vector<8x128xf32>
    %42 = arith.addf %38, %41 : vector<8x128xf32>
    %43 = math.tanh %42 : vector<8x128xf32>
    %cst_20 = arith.constant 1.000000e+00 : f32
    %44 = vector.broadcast %cst_20 : f32 to vector<8x128xf32>
    %45 = arith.subf %44, %37 : vector<8x128xf32>
    %46 = arith.mulf %45, %43 : vector<8x128xf32>
    %47 = arith.mulf %37, %15 : vector<8x128xf32>
    %48 = arith.addf %46, %47 : vector<8x128xf32>
    %c1_i32 = arith.constant 1 : i32
    %c8_i32_21 = arith.constant 8 : i32
    %49 = arith.muli %c1_i32, %c8_i32_21 : i32
    %50 = tpu.assume_multiple %49, 8 : i32
    %51 = arith.index_cast %50 : i32 to index
    %c0_22 = arith.constant 0 : index
    %52 = vector.load %arg10[%51, %c0_22] : memref<64x384xf32, #tpu.memory_space<vmem>>, vector<8x384xf32>
    %53 = arith.truncf %48 : vector<8x128xf32> to vector<8x128xbf16>
    %cst_23 = arith.constant dense<0.000000e+00> : vector<8x384xf32>
    %54 = tpu.matmul %53, %0, %cst_23 {dimension_numbers = #tpu.dot_dimension_numbers<[1], [0], [0], [1], [0, 0, 1, 1], [], []>} : vector<8x128xbf16>, vector<128x384xbf16>, vector<8x384xf32> -> vector<8x384xf32>
    %55 = vector.extract_strided_slice %52 {offsets = [0, 0], sizes = [8, 128], strides = [1, 1]} : vector<8x384xf32> to vector<8x128xf32>
    %56 = vector.extract_strided_slice %54 {offsets = [0, 0], sizes = [8, 128], strides = [1, 1]} : vector<8x384xf32> to vector<8x128xf32>
    %57 = arith.addf %55, %56 : vector<8x128xf32>
    %58 = arith.negf %57 : vector<8x128xf32>
    %59 = math.exp %58 : vector<8x128xf32>
    %cst_24 = arith.constant 1.000000e+00 : f32
    %60 = vector.broadcast %cst_24 : f32 to vector<8x128xf32>
    %61 = arith.addf %60, %59 : vector<8x128xf32>
    %62 = arith.divf %60, %61 : vector<8x128xf32>
    %63 = vector.extract_strided_slice %52 {offsets = [0, 128], sizes = [8, 128], strides = [1, 1]} : vector<8x384xf32> to vector<8x128xf32>
    %64 = vector.extract_strided_slice %54 {offsets = [0, 128], sizes = [8, 128], strides = [1, 1]} : vector<8x384xf32> to vector<8x128xf32>
    %65 = arith.addf %63, %64 : vector<8x128xf32>
    %66 = arith.negf %65 : vector<8x128xf32>
    %67 = math.exp %66 : vector<8x128xf32>
    %cst_25 = arith.constant 1.000000e+00 : f32
    %68 = vector.broadcast %cst_25 : f32 to vector<8x128xf32>
    %69 = arith.addf %68, %67 : vector<8x128xf32>
    %70 = arith.divf %68, %69 : vector<8x128xf32>
    %71 = vector.extract_strided_slice %52 {offsets = [0, 256], sizes = [8, 128], strides = [1, 1]} : vector<8x384xf32> to vector<8x128xf32>
    %72 = vector.extract_strided_slice %54 {offsets = [0, 256], sizes = [8, 128], strides = [1, 1]} : vector<8x384xf32> to vector<8x128xf32>
    %73 = arith.addf %72, %4 : vector<8x128xf32>
    %74 = arith.mulf %62, %73 : vector<8x128xf32>
    %75 = arith.addf %71, %74 : vector<8x128xf32>
    %76 = math.tanh %75 : vector<8x128xf32>
    %cst_26 = arith.constant 1.000000e+00 : f32
    %77 = vector.broadcast %cst_26 : f32 to vector<8x128xf32>
    %78 = arith.subf %77, %70 : vector<8x128xf32>
    %79 = arith.mulf %78, %76 : vector<8x128xf32>
    %80 = arith.mulf %70, %48 : vector<8x128xf32>
    %81 = arith.addf %79, %80 : vector<8x128xf32>
    %c2_i32 = arith.constant 2 : i32
    %c8_i32_27 = arith.constant 8 : i32
    %82 = arith.muli %c2_i32, %c8_i32_27 : i32
    %83 = tpu.assume_multiple %82, 8 : i32
    %84 = arith.index_cast %83 : i32 to index
    %c0_28 = arith.constant 0 : index
    %85 = vector.load %arg10[%84, %c0_28] : memref<64x384xf32, #tpu.memory_space<vmem>>, vector<8x384xf32>
    %86 = arith.truncf %81 : vector<8x128xf32> to vector<8x128xbf16>
    %cst_29 = arith.constant dense<0.000000e+00> : vector<8x384xf32>
    %87 = tpu.matmul %86, %0, %cst_29 {dimension_numbers = #tpu.dot_dimension_numbers<[1], [0], [0], [1], [0, 0, 1, 1], [], []>} : vector<8x128xbf16>, vector<128x384xbf16>, vector<8x384xf32> -> vector<8x384xf32>
    %88 = vector.extract_strided_slice %85 {offsets = [0, 0], sizes = [8, 128], strides = [1, 1]} : vector<8x384xf32> to vector<8x128xf32>
    %89 = vector.extract_strided_slice %87 {offsets = [0, 0], sizes = [8, 128], strides = [1, 1]} : vector<8x384xf32> to vector<8x128xf32>
    %90 = arith.addf %88, %89 : vector<8x128xf32>
    %91 = arith.negf %90 : vector<8x128xf32>
    %92 = math.exp %91 : vector<8x128xf32>
    %cst_30 = arith.constant 1.000000e+00 : f32
    %93 = vector.broadcast %cst_30 : f32 to vector<8x128xf32>
    %94 = arith.addf %93, %92 : vector<8x128xf32>
    %95 = arith.divf %93, %94 : vector<8x128xf32>
    %96 = vector.extract_strided_slice %85 {offsets = [0, 128], sizes = [8, 128], strides = [1, 1]} : vector<8x384xf32> to vector<8x128xf32>
    %97 = vector.extract_strided_slice %87 {offsets = [0, 128], sizes = [8, 128], strides = [1, 1]} : vector<8x384xf32> to vector<8x128xf32>
    %98 = arith.addf %96, %97 : vector<8x128xf32>
    %99 = arith.negf %98 : vector<8x128xf32>
    %100 = math.exp %99 : vector<8x128xf32>
    %cst_31 = arith.constant 1.000000e+00 : f32
    %101 = vector.broadcast %cst_31 : f32 to vector<8x128xf32>
    %102 = arith.addf %101, %100 : vector<8x128xf32>
    %103 = arith.divf %101, %102 : vector<8x128xf32>
    %104 = vector.extract_strided_slice %85 {offsets = [0, 256], sizes = [8, 128], strides = [1, 1]} : vector<8x384xf32> to vector<8x128xf32>
    %105 = vector.extract_strided_slice %87 {offsets = [0, 256], sizes = [8, 128], strides = [1, 1]} : vector<8x384xf32> to vector<8x128xf32>
    %106 = arith.addf %105, %4 : vector<8x128xf32>
    %107 = arith.mulf %95, %106 : vector<8x128xf32>
    %108 = arith.addf %104, %107 : vector<8x128xf32>
    %109 = math.tanh %108 : vector<8x128xf32>
    %cst_32 = arith.constant 1.000000e+00 : f32
    %110 = vector.broadcast %cst_32 : f32 to vector<8x128xf32>
    %111 = arith.subf %110, %103 : vector<8x128xf32>
    %112 = arith.mulf %111, %109 : vector<8x128xf32>
    %113 = arith.mulf %103, %81 : vector<8x128xf32>
    %114 = arith.addf %112, %113 : vector<8x128xf32>
    %c3_i32 = arith.constant 3 : i32
    %c8_i32_33 = arith.constant 8 : i32
    %115 = arith.muli %c3_i32, %c8_i32_33 : i32
    %116 = tpu.assume_multiple %115, 8 : i32
    %117 = arith.index_cast %116 : i32 to index
    %c0_34 = arith.constant 0 : index
    %118 = vector.load %arg10[%117, %c0_34] : memref<64x384xf32, #tpu.memory_space<vmem>>, vector<8x384xf32>
    %119 = arith.truncf %114 : vector<8x128xf32> to vector<8x128xbf16>
    %cst_35 = arith.constant dense<0.000000e+00> : vector<8x384xf32>
    %120 = tpu.matmul %119, %0, %cst_35 {dimension_numbers = #tpu.dot_dimension_numbers<[1], [0], [0], [1], [0, 0, 1, 1], [], []>} : vector<8x128xbf16>, vector<128x384xbf16>, vector<8x384xf32> -> vector<8x384xf32>
    %121 = vector.extract_strided_slice %118 {offsets = [0, 0], sizes = [8, 128], strides = [1, 1]} : vector<8x384xf32> to vector<8x128xf32>
    %122 = vector.extract_strided_slice %120 {offsets = [0, 0], sizes = [8, 128], strides = [1, 1]} : vector<8x384xf32> to vector<8x128xf32>
    %123 = arith.addf %121, %122 : vector<8x128xf32>
    %124 = arith.negf %123 : vector<8x128xf32>
    %125 = math.exp %124 : vector<8x128xf32>
    %cst_36 = arith.constant 1.000000e+00 : f32
    %126 = vector.broadcast %cst_36 : f32 to vector<8x128xf32>
    %127 = arith.addf %126, %125 : vector<8x128xf32>
    %128 = arith.divf %126, %127 : vector<8x128xf32>
    %129 = vector.extract_strided_slice %118 {offsets = [0, 128], sizes = [8, 128], strides = [1, 1]} : vector<8x384xf32> to vector<8x128xf32>
    %130 = vector.extract_strided_slice %120 {offsets = [0, 128], sizes = [8, 128], strides = [1, 1]} : vector<8x384xf32> to vector<8x128xf32>
    %131 = arith.addf %129, %130 : vector<8x128xf32>
    %132 = arith.negf %131 : vector<8x128xf32>
    %133 = math.exp %132 : vector<8x128xf32>
    %cst_37 = arith.constant 1.000000e+00 : f32
    %134 = vector.broadcast %cst_37 : f32 to vector<8x128xf32>
    %135 = arith.addf %134, %133 : vector<8x128xf32>
    %136 = arith.divf %134, %135 : vector<8x128xf32>
    %137 = vector.extract_strided_slice %118 {offsets = [0, 256], sizes = [8, 128], strides = [1, 1]} : vector<8x384xf32> to vector<8x128xf32>
    %138 = vector.extract_strided_slice %120 {offsets = [0, 256], sizes = [8, 128], strides = [1, 1]} : vector<8x384xf32> to vector<8x128xf32>
    %139 = arith.addf %138, %4 : vector<8x128xf32>
    %140 = arith.mulf %128, %139 : vector<8x128xf32>
    %141 = arith.addf %137, %140 : vector<8x128xf32>
    %142 = math.tanh %141 : vector<8x128xf32>
    %cst_38 = arith.constant 1.000000e+00 : f32
    %143 = vector.broadcast %cst_38 : f32 to vector<8x128xf32>
    %144 = arith.subf %143, %136 : vector<8x128xf32>
    %145 = arith.mulf %144, %142 : vector<8x128xf32>
    %146 = arith.mulf %136, %114 : vector<8x128xf32>
    %147 = arith.addf %145, %146 : vector<8x128xf32>
    %c4_i32 = arith.constant 4 : i32
    %c8_i32_39 = arith.constant 8 : i32
    %148 = arith.muli %c4_i32, %c8_i32_39 : i32
    %149 = tpu.assume_multiple %148, 8 : i32
    %150 = arith.index_cast %149 : i32 to index
    %c0_40 = arith.constant 0 : index
    %151 = vector.load %arg10[%150, %c0_40] : memref<64x384xf32, #tpu.memory_space<vmem>>, vector<8x384xf32>
    %152 = arith.truncf %147 : vector<8x128xf32> to vector<8x128xbf16>
    %cst_41 = arith.constant dense<0.000000e+00> : vector<8x384xf32>
    %153 = tpu.matmul %152, %0, %cst_41 {dimension_numbers = #tpu.dot_dimension_numbers<[1], [0], [0], [1], [0, 0, 1, 1], [], []>} : vector<8x128xbf16>, vector<128x384xbf16>, vector<8x384xf32> -> vector<8x384xf32>
    %154 = vector.extract_strided_slice %151 {offsets = [0, 0], sizes = [8, 128], strides = [1, 1]} : vector<8x384xf32> to vector<8x128xf32>
    %155 = vector.extract_strided_slice %153 {offsets = [0, 0], sizes = [8, 128], strides = [1, 1]} : vector<8x384xf32> to vector<8x128xf32>
    %156 = arith.addf %154, %155 : vector<8x128xf32>
    %157 = arith.negf %156 : vector<8x128xf32>
    %158 = math.exp %157 : vector<8x128xf32>
    %cst_42 = arith.constant 1.000000e+00 : f32
    %159 = vector.broadcast %cst_42 : f32 to vector<8x128xf32>
    %160 = arith.addf %159, %158 : vector<8x128xf32>
    %161 = arith.divf %159, %160 : vector<8x128xf32>
    %162 = vector.extract_strided_slice %151 {offsets = [0, 128], sizes = [8, 128], strides = [1, 1]} : vector<8x384xf32> to vector<8x128xf32>
    %163 = vector.extract_strided_slice %153 {offsets = [0, 128], sizes = [8, 128], strides = [1, 1]} : vector<8x384xf32> to vector<8x128xf32>
    %164 = arith.addf %162, %163 : vector<8x128xf32>
    %165 = arith.negf %164 : vector<8x128xf32>
    %166 = math.exp %165 : vector<8x128xf32>
    %cst_43 = arith.constant 1.000000e+00 : f32
    %167 = vector.broadcast %cst_43 : f32 to vector<8x128xf32>
    %168 = arith.addf %167, %166 : vector<8x128xf32>
    %169 = arith.divf %167, %168 : vector<8x128xf32>
    %170 = vector.extract_strided_slice %151 {offsets = [0, 256], sizes = [8, 128], strides = [1, 1]} : vector<8x384xf32> to vector<8x128xf32>
    %171 = vector.extract_strided_slice %153 {offsets = [0, 256], sizes = [8, 128], strides = [1, 1]} : vector<8x384xf32> to vector<8x128xf32>
    %172 = arith.addf %171, %4 : vector<8x128xf32>
    %173 = arith.mulf %161, %172 : vector<8x128xf32>
    %174 = arith.addf %170, %173 : vector<8x128xf32>
    %175 = math.tanh %174 : vector<8x128xf32>
    %cst_44 = arith.constant 1.000000e+00 : f32
    %176 = vector.broadcast %cst_44 : f32 to vector<8x128xf32>
    %177 = arith.subf %176, %169 : vector<8x128xf32>
    %178 = arith.mulf %177, %175 : vector<8x128xf32>
    %179 = arith.mulf %169, %147 : vector<8x128xf32>
    %180 = arith.addf %178, %179 : vector<8x128xf32>
    %c5_i32 = arith.constant 5 : i32
    %c8_i32_45 = arith.constant 8 : i32
    %181 = arith.muli %c5_i32, %c8_i32_45 : i32
    %182 = tpu.assume_multiple %181, 8 : i32
    %183 = arith.index_cast %182 : i32 to index
    %c0_46 = arith.constant 0 : index
    %184 = vector.load %arg10[%183, %c0_46] : memref<64x384xf32, #tpu.memory_space<vmem>>, vector<8x384xf32>
    %185 = arith.truncf %180 : vector<8x128xf32> to vector<8x128xbf16>
    %cst_47 = arith.constant dense<0.000000e+00> : vector<8x384xf32>
    %186 = tpu.matmul %185, %0, %cst_47 {dimension_numbers = #tpu.dot_dimension_numbers<[1], [0], [0], [1], [0, 0, 1, 1], [], []>} : vector<8x128xbf16>, vector<128x384xbf16>, vector<8x384xf32> -> vector<8x384xf32>
    %187 = vector.extract_strided_slice %184 {offsets = [0, 0], sizes = [8, 128], strides = [1, 1]} : vector<8x384xf32> to vector<8x128xf32>
    %188 = vector.extract_strided_slice %186 {offsets = [0, 0], sizes = [8, 128], strides = [1, 1]} : vector<8x384xf32> to vector<8x128xf32>
    %189 = arith.addf %187, %188 : vector<8x128xf32>
    %190 = arith.negf %189 : vector<8x128xf32>
    %191 = math.exp %190 : vector<8x128xf32>
    %cst_48 = arith.constant 1.000000e+00 : f32
    %192 = vector.broadcast %cst_48 : f32 to vector<8x128xf32>
    %193 = arith.addf %192, %191 : vector<8x128xf32>
    %194 = arith.divf %192, %193 : vector<8x128xf32>
    %195 = vector.extract_strided_slice %184 {offsets = [0, 128], sizes = [8, 128], strides = [1, 1]} : vector<8x384xf32> to vector<8x128xf32>
    %196 = vector.extract_strided_slice %186 {offsets = [0, 128], sizes = [8, 128], strides = [1, 1]} : vector<8x384xf32> to vector<8x128xf32>
    %197 = arith.addf %195, %196 : vector<8x128xf32>
    %198 = arith.negf %197 : vector<8x128xf32>
    %199 = math.exp %198 : vector<8x128xf32>
    %cst_49 = arith.constant 1.000000e+00 : f32
    %200 = vector.broadcast %cst_49 : f32 to vector<8x128xf32>
    %201 = arith.addf %200, %199 : vector<8x128xf32>
    %202 = arith.divf %200, %201 : vector<8x128xf32>
    %203 = vector.extract_strided_slice %184 {offsets = [0, 256], sizes = [8, 128], strides = [1, 1]} : vector<8x384xf32> to vector<8x128xf32>
    %204 = vector.extract_strided_slice %186 {offsets = [0, 256], sizes = [8, 128], strides = [1, 1]} : vector<8x384xf32> to vector<8x128xf32>
    %205 = arith.addf %204, %4 : vector<8x128xf32>
    %206 = arith.mulf %194, %205 : vector<8x128xf32>
    %207 = arith.addf %203, %206 : vector<8x128xf32>
    %208 = math.tanh %207 : vector<8x128xf32>
    %cst_50 = arith.constant 1.000000e+00 : f32
    %209 = vector.broadcast %cst_50 : f32 to vector<8x128xf32>
    %210 = arith.subf %209, %202 : vector<8x128xf32>
    %211 = arith.mulf %210, %208 : vector<8x128xf32>
    %212 = arith.mulf %202, %180 : vector<8x128xf32>
    %213 = arith.addf %211, %212 : vector<8x128xf32>
    %c6_i32 = arith.constant 6 : i32
    %c8_i32_51 = arith.constant 8 : i32
    %214 = arith.muli %c6_i32, %c8_i32_51 : i32
    %215 = tpu.assume_multiple %214, 8 : i32
    %216 = arith.index_cast %215 : i32 to index
    %c0_52 = arith.constant 0 : index
    %217 = vector.load %arg10[%216, %c0_52] : memref<64x384xf32, #tpu.memory_space<vmem>>, vector<8x384xf32>
    %218 = arith.truncf %213 : vector<8x128xf32> to vector<8x128xbf16>
    %cst_53 = arith.constant dense<0.000000e+00> : vector<8x384xf32>
    %219 = tpu.matmul %218, %0, %cst_53 {dimension_numbers = #tpu.dot_dimension_numbers<[1], [0], [0], [1], [0, 0, 1, 1], [], []>} : vector<8x128xbf16>, vector<128x384xbf16>, vector<8x384xf32> -> vector<8x384xf32>
    %220 = vector.extract_strided_slice %217 {offsets = [0, 0], sizes = [8, 128], strides = [1, 1]} : vector<8x384xf32> to vector<8x128xf32>
    %221 = vector.extract_strided_slice %219 {offsets = [0, 0], sizes = [8, 128], strides = [1, 1]} : vector<8x384xf32> to vector<8x128xf32>
    %222 = arith.addf %220, %221 : vector<8x128xf32>
    %223 = arith.negf %222 : vector<8x128xf32>
    %224 = math.exp %223 : vector<8x128xf32>
    %cst_54 = arith.constant 1.000000e+00 : f32
    %225 = vector.broadcast %cst_54 : f32 to vector<8x128xf32>
    %226 = arith.addf %225, %224 : vector<8x128xf32>
    %227 = arith.divf %225, %226 : vector<8x128xf32>
    %228 = vector.extract_strided_slice %217 {offsets = [0, 128], sizes = [8, 128], strides = [1, 1]} : vector<8x384xf32> to vector<8x128xf32>
    %229 = vector.extract_strided_slice %219 {offsets = [0, 128], sizes = [8, 128], strides = [1, 1]} : vector<8x384xf32> to vector<8x128xf32>
    %230 = arith.addf %228, %229 : vector<8x128xf32>
    %231 = arith.negf %230 : vector<8x128xf32>
    %232 = math.exp %231 : vector<8x128xf32>
    %cst_55 = arith.constant 1.000000e+00 : f32
    %233 = vector.broadcast %cst_55 : f32 to vector<8x128xf32>
    %234 = arith.addf %233, %232 : vector<8x128xf32>
    %235 = arith.divf %233, %234 : vector<8x128xf32>
    %236 = vector.extract_strided_slice %217 {offsets = [0, 256], sizes = [8, 128], strides = [1, 1]} : vector<8x384xf32> to vector<8x128xf32>
    %237 = vector.extract_strided_slice %219 {offsets = [0, 256], sizes = [8, 128], strides = [1, 1]} : vector<8x384xf32> to vector<8x128xf32>
    %238 = arith.addf %237, %4 : vector<8x128xf32>
    %239 = arith.mulf %227, %238 : vector<8x128xf32>
    %240 = arith.addf %236, %239 : vector<8x128xf32>
    %241 = math.tanh %240 : vector<8x128xf32>
    %cst_56 = arith.constant 1.000000e+00 : f32
    %242 = vector.broadcast %cst_56 : f32 to vector<8x128xf32>
    %243 = arith.subf %242, %235 : vector<8x128xf32>
    %244 = arith.mulf %243, %241 : vector<8x128xf32>
    %245 = arith.mulf %235, %213 : vector<8x128xf32>
    %246 = arith.addf %244, %245 : vector<8x128xf32>
    %c7_i32 = arith.constant 7 : i32
    %c8_i32_57 = arith.constant 8 : i32
    %247 = arith.muli %c7_i32, %c8_i32_57 : i32
    %248 = tpu.assume_multiple %247, 8 : i32
    %249 = arith.index_cast %248 : i32 to index
    %c0_58 = arith.constant 0 : index
    %250 = vector.load %arg10[%249, %c0_58] : memref<64x384xf32, #tpu.memory_space<vmem>>, vector<8x384xf32>
    %251 = arith.truncf %246 : vector<8x128xf32> to vector<8x128xbf16>
    %cst_59 = arith.constant dense<0.000000e+00> : vector<8x384xf32>
    %252 = tpu.matmul %251, %0, %cst_59 {dimension_numbers = #tpu.dot_dimension_numbers<[1], [0], [0], [1], [0, 0, 1, 1], [], []>} : vector<8x128xbf16>, vector<128x384xbf16>, vector<8x384xf32> -> vector<8x384xf32>
    %253 = vector.extract_strided_slice %250 {offsets = [0, 0], sizes = [8, 128], strides = [1, 1]} : vector<8x384xf32> to vector<8x128xf32>
    %254 = vector.extract_strided_slice %252 {offsets = [0, 0], sizes = [8, 128], strides = [1, 1]} : vector<8x384xf32> to vector<8x128xf32>
    %255 = arith.addf %253, %254 : vector<8x128xf32>
    %256 = arith.negf %255 : vector<8x128xf32>
    %257 = math.exp %256 : vector<8x128xf32>
    %cst_60 = arith.constant 1.000000e+00 : f32
    %258 = vector.broadcast %cst_60 : f32 to vector<8x128xf32>
    %259 = arith.addf %258, %257 : vector<8x128xf32>
    %260 = arith.divf %258, %259 : vector<8x128xf32>
    %261 = vector.extract_strided_slice %250 {offsets = [0, 128], sizes = [8, 128], strides = [1, 1]} : vector<8x384xf32> to vector<8x128xf32>
    %262 = vector.extract_strided_slice %252 {offsets = [0, 128], sizes = [8, 128], strides = [1, 1]} : vector<8x384xf32> to vector<8x128xf32>
    %263 = arith.addf %261, %262 : vector<8x128xf32>
    %264 = arith.negf %263 : vector<8x128xf32>
    %265 = math.exp %264 : vector<8x128xf32>
    %cst_61 = arith.constant 1.000000e+00 : f32
    %266 = vector.broadcast %cst_61 : f32 to vector<8x128xf32>
    %267 = arith.addf %266, %265 : vector<8x128xf32>
    %268 = arith.divf %266, %267 : vector<8x128xf32>
    %269 = vector.extract_strided_slice %250 {offsets = [0, 256], sizes = [8, 128], strides = [1, 1]} : vector<8x384xf32> to vector<8x128xf32>
    %270 = vector.extract_strided_slice %252 {offsets = [0, 256], sizes = [8, 128], strides = [1, 1]} : vector<8x384xf32> to vector<8x128xf32>
    %271 = arith.addf %270, %4 : vector<8x128xf32>
    %272 = arith.mulf %260, %271 : vector<8x128xf32>
    %273 = arith.addf %269, %272 : vector<8x128xf32>
    %274 = math.tanh %273 : vector<8x128xf32>
    %cst_62 = arith.constant 1.000000e+00 : f32
    %275 = vector.broadcast %cst_62 : f32 to vector<8x128xf32>
    %276 = arith.subf %275, %268 : vector<8x128xf32>
    %277 = arith.mulf %276, %274 : vector<8x128xf32>
    %278 = arith.mulf %268, %246 : vector<8x128xf32>
    %279 = arith.addf %277, %278 : vector<8x128xf32>
    %c8_i32_63 = arith.constant 8 : i32
    %c0_64 = arith.constant 0 : index
    %c0_65 = arith.constant 0 : index
    %280 = vector.load %arg11[%c0_64, %c0_65] : memref<32x128xf32, #tpu.memory_space<vmem>>, vector<8x128xf32>
    tpu.vector_store %arg11[%c0_64, %c0_65], %279 {strides = array<i32>} : memref<32x128xf32, #tpu.memory_space<vmem>>, vector<8x128xf32>,
    %c1_i32_66 = arith.constant 1 : i32
    %281 = arith.truncf %279 : vector<8x128xf32> to vector<8x128xbf16>
    %cst_67 = arith.constant dense<0.000000e+00> : vector<8x768xf32>
    %282 = tpu.matmul %281, %1, %cst_67 {dimension_numbers = #tpu.dot_dimension_numbers<[1], [0], [0], [1], [0, 0, 1, 1], [], []>} : vector<8x128xbf16>, vector<128x768xbf16>, vector<8x768xf32> -> vector<8x768xf32>
    %283 = vector.extract_strided_slice %282 {offsets = [0, 0], sizes = [8, 384], strides = [1, 1]} : vector<8x768xf32> to vector<8x384xf32>
    %284 = arith.addf %283, %7 : vector<8x384xf32>
    %285 = vector.extract_strided_slice %282 {offsets = [0, 384], sizes = [8, 384], strides = [1, 1]} : vector<8x768xf32> to vector<8x384xf32>
    %286 = vector.extract_strided_slice %284 {offsets = [0, 0], sizes = [8, 128], strides = [1, 1]} : vector<8x384xf32> to vector<8x128xf32>
    %287 = vector.extract_strided_slice %285 {offsets = [0, 0], sizes = [8, 128], strides = [1, 1]} : vector<8x384xf32> to vector<8x128xf32>
    %288 = arith.addf %286, %287 : vector<8x128xf32>
    %289 = arith.negf %288 : vector<8x128xf32>
    %290 = math.exp %289 : vector<8x128xf32>
    %cst_68 = arith.constant 1.000000e+00 : f32
    %291 = vector.broadcast %cst_68 : f32 to vector<8x128xf32>
    %292 = arith.addf %291, %290 : vector<8x128xf32>
    %293 = arith.divf %291, %292 : vector<8x128xf32>
    %294 = vector.extract_strided_slice %284 {offsets = [0, 128], sizes = [8, 128], strides = [1, 1]} : vector<8x384xf32> to vector<8x128xf32>
    %295 = vector.extract_strided_slice %285 {offsets = [0, 128], sizes = [8, 128], strides = [1, 1]} : vector<8x384xf32> to vector<8x128xf32>
    %296 = arith.addf %294, %295 : vector<8x128xf32>
    %297 = arith.negf %296 : vector<8x128xf32>
    %298 = math.exp %297 : vector<8x128xf32>
    %cst_69 = arith.constant 1.000000e+00 : f32
    %299 = vector.broadcast %cst_69 : f32 to vector<8x128xf32>
    %300 = arith.addf %299, %298 : vector<8x128xf32>
    %301 = arith.divf %299, %300 : vector<8x128xf32>
    %302 = vector.extract_strided_slice %284 {offsets = [0, 256], sizes = [8, 128], strides = [1, 1]} : vector<8x384xf32> to vector<8x128xf32>
    %303 = vector.extract_strided_slice %285 {offsets = [0, 256], sizes = [8, 128], strides = [1, 1]} : vector<8x384xf32> to vector<8x128xf32>
    %304 = arith.addf %303, %4 : vector<8x128xf32>
    %305 = arith.mulf %293, %304 : vector<8x128xf32>
    %306 = arith.addf %302, %305 : vector<8x128xf32>
    %307 = math.tanh %306 : vector<8x128xf32>
    %cst_70 = arith.constant 1.000000e+00 : f32
    %308 = vector.broadcast %cst_70 : f32 to vector<8x128xf32>
    %309 = arith.subf %308, %301 : vector<8x128xf32>
    %310 = arith.mulf %309, %307 : vector<8x128xf32>
    %311 = arith.mulf %301, %279 : vector<8x128xf32>
    %312 = arith.addf %310, %311 : vector<8x128xf32>
    %c8_i32_71 = arith.constant 8 : i32
    %313 = arith.muli %c1_i32_66, %c8_i32_71 : i32
    %314 = tpu.assume_multiple %313, 8 : i32
    %315 = arith.index_cast %314 : i32 to index
    %c0_72 = arith.constant 0 : index
    %316 = vector.load %arg11[%315, %c0_72] : memref<32x128xf32, #tpu.memory_space<vmem>>, vector<8x128xf32>
    tpu.vector_store %arg11[%315, %c0_72], %312 {strides = array<i32>} : memref<32x128xf32, #tpu.memory_space<vmem>>, vector<8x128xf32>,
    %c2_i32_73 = arith.constant 2 : i32
    %317 = arith.truncf %312 : vector<8x128xf32> to vector<8x128xbf16>
    %cst_74 = arith.constant dense<0.000000e+00> : vector<8x768xf32>
    %318 = tpu.matmul %317, %1, %cst_74 {dimension_numbers = #tpu.dot_dimension_numbers<[1], [0], [0], [1], [0, 0, 1, 1], [], []>} : vector<8x128xbf16>, vector<128x768xbf16>, vector<8x768xf32> -> vector<8x768xf32>
    %319 = vector.extract_strided_slice %318 {offsets = [0, 0], sizes = [8, 384], strides = [1, 1]} : vector<8x768xf32> to vector<8x384xf32>
    %320 = arith.addf %319, %7 : vector<8x384xf32>
    %321 = vector.extract_strided_slice %318 {offsets = [0, 384], sizes = [8, 384], strides = [1, 1]} : vector<8x768xf32> to vector<8x384xf32>
    %322 = vector.extract_strided_slice %320 {offsets = [0, 0], sizes = [8, 128], strides = [1, 1]} : vector<8x384xf32> to vector<8x128xf32>
    %323 = vector.extract_strided_slice %321 {offsets = [0, 0], sizes = [8, 128], strides = [1, 1]} : vector<8x384xf32> to vector<8x128xf32>
    %324 = arith.addf %322, %323 : vector<8x128xf32>
    %325 = arith.negf %324 : vector<8x128xf32>
    %326 = math.exp %325 : vector<8x128xf32>
    %cst_75 = arith.constant 1.000000e+00 : f32
    %327 = vector.broadcast %cst_75 : f32 to vector<8x128xf32>
    %328 = arith.addf %327, %326 : vector<8x128xf32>
    %329 = arith.divf %327, %328 : vector<8x128xf32>
    %330 = vector.extract_strided_slice %320 {offsets = [0, 128], sizes = [8, 128], strides = [1, 1]} : vector<8x384xf32> to vector<8x128xf32>
    %331 = vector.extract_strided_slice %321 {offsets = [0, 128], sizes = [8, 128], strides = [1, 1]} : vector<8x384xf32> to vector<8x128xf32>
    %332 = arith.addf %330, %331 : vector<8x128xf32>
    %333 = arith.negf %332 : vector<8x128xf32>
    %334 = math.exp %333 : vector<8x128xf32>
    %cst_76 = arith.constant 1.000000e+00 : f32
    %335 = vector.broadcast %cst_76 : f32 to vector<8x128xf32>
    %336 = arith.addf %335, %334 : vector<8x128xf32>
    %337 = arith.divf %335, %336 : vector<8x128xf32>
    %338 = vector.extract_strided_slice %320 {offsets = [0, 256], sizes = [8, 128], strides = [1, 1]} : vector<8x384xf32> to vector<8x128xf32>
    %339 = vector.extract_strided_slice %321 {offsets = [0, 256], sizes = [8, 128], strides = [1, 1]} : vector<8x384xf32> to vector<8x128xf32>
    %340 = arith.addf %339, %4 : vector<8x128xf32>
    %341 = arith.mulf %329, %340 : vector<8x128xf32>
    %342 = arith.addf %338, %341 : vector<8x128xf32>
    %343 = math.tanh %342 : vector<8x128xf32>
    %cst_77 = arith.constant 1.000000e+00 : f32
    %344 = vector.broadcast %cst_77 : f32 to vector<8x128xf32>
    %345 = arith.subf %344, %337 : vector<8x128xf32>
    %346 = arith.mulf %345, %343 : vector<8x128xf32>
    %347 = arith.mulf %337, %312 : vector<8x128xf32>
    %348 = arith.addf %346, %347 : vector<8x128xf32>
    %c8_i32_78 = arith.constant 8 : i32
    %349 = arith.muli %c2_i32_73, %c8_i32_78 : i32
    %350 = tpu.assume_multiple %349, 8 : i32
    %351 = arith.index_cast %350 : i32 to index
    %c0_79 = arith.constant 0 : index
    %352 = vector.load %arg11[%351, %c0_79] : memref<32x128xf32, #tpu.memory_space<vmem>>, vector<8x128xf32>
    tpu.vector_store %arg11[%351, %c0_79], %348 {strides = array<i32>} : memref<32x128xf32, #tpu.memory_space<vmem>>, vector<8x128xf32>,
    %c3_i32_80 = arith.constant 3 : i32
    %353 = arith.truncf %348 : vector<8x128xf32> to vector<8x128xbf16>
    %cst_81 = arith.constant dense<0.000000e+00> : vector<8x768xf32>
    %354 = tpu.matmul %353, %1, %cst_81 {dimension_numbers = #tpu.dot_dimension_numbers<[1], [0], [0], [1], [0, 0, 1, 1], [], []>} : vector<8x128xbf16>, vector<128x768xbf16>, vector<8x768xf32> -> vector<8x768xf32>
    %355 = vector.extract_strided_slice %354 {offsets = [0, 0], sizes = [8, 384], strides = [1, 1]} : vector<8x768xf32> to vector<8x384xf32>
    %356 = arith.addf %355, %7 : vector<8x384xf32>
    %357 = vector.extract_strided_slice %354 {offsets = [0, 384], sizes = [8, 384], strides = [1, 1]} : vector<8x768xf32> to vector<8x384xf32>
    %358 = vector.extract_strided_slice %356 {offsets = [0, 0], sizes = [8, 128], strides = [1, 1]} : vector<8x384xf32> to vector<8x128xf32>
    %359 = vector.extract_strided_slice %357 {offsets = [0, 0], sizes = [8, 128], strides = [1, 1]} : vector<8x384xf32> to vector<8x128xf32>
    %360 = arith.addf %358, %359 : vector<8x128xf32>
    %361 = arith.negf %360 : vector<8x128xf32>
    %362 = math.exp %361 : vector<8x128xf32>
    %cst_82 = arith.constant 1.000000e+00 : f32
    %363 = vector.broadcast %cst_82 : f32 to vector<8x128xf32>
    %364 = arith.addf %363, %362 : vector<8x128xf32>
    %365 = arith.divf %363, %364 : vector<8x128xf32>
    %366 = vector.extract_strided_slice %356 {offsets = [0, 128], sizes = [8, 128], strides = [1, 1]} : vector<8x384xf32> to vector<8x128xf32>
    %367 = vector.extract_strided_slice %357 {offsets = [0, 128], sizes = [8, 128], strides = [1, 1]} : vector<8x384xf32> to vector<8x128xf32>
    %368 = arith.addf %366, %367 : vector<8x128xf32>
    %369 = arith.negf %368 : vector<8x128xf32>
    %370 = math.exp %369 : vector<8x128xf32>
    %cst_83 = arith.constant 1.000000e+00 : f32
    %371 = vector.broadcast %cst_83 : f32 to vector<8x128xf32>
    %372 = arith.addf %371, %370 : vector<8x128xf32>
    %373 = arith.divf %371, %372 : vector<8x128xf32>
    %374 = vector.extract_strided_slice %356 {offsets = [0, 256], sizes = [8, 128], strides = [1, 1]} : vector<8x384xf32> to vector<8x128xf32>
    %375 = vector.extract_strided_slice %357 {offsets = [0, 256], sizes = [8, 128], strides = [1, 1]} : vector<8x384xf32> to vector<8x128xf32>
    %376 = arith.addf %375, %4 : vector<8x128xf32>
    %377 = arith.mulf %365, %376 : vector<8x128xf32>
    %378 = arith.addf %374, %377 : vector<8x128xf32>
    %379 = math.tanh %378 : vector<8x128xf32>
    %cst_84 = arith.constant 1.000000e+00 : f32
    %380 = vector.broadcast %cst_84 : f32 to vector<8x128xf32>
    %381 = arith.subf %380, %373 : vector<8x128xf32>
    %382 = arith.mulf %381, %379 : vector<8x128xf32>
    %383 = arith.mulf %373, %348 : vector<8x128xf32>
    %384 = arith.addf %382, %383 : vector<8x128xf32>
    %c8_i32_85 = arith.constant 8 : i32
    %385 = arith.muli %c3_i32_80, %c8_i32_85 : i32
    %386 = tpu.assume_multiple %385, 8 : i32
    %387 = arith.index_cast %386 : i32 to index
    %c0_86 = arith.constant 0 : index
    %388 = vector.load %arg11[%387, %c0_86] : memref<32x128xf32, #tpu.memory_space<vmem>>, vector<8x128xf32>
    tpu.vector_store %arg11[%387, %c0_86], %384 {strides = array<i32>} : memref<32x128xf32, #tpu.memory_space<vmem>>, vector<8x128xf32>,
    %c3_i32_87 = arith.constant 3 : i32
    %c0_88 = arith.constant 0 : index
    %c0_89 = arith.constant 0 : index
    %389 = vector.load %arg11[%c0_88, %c0_89] : memref<32x128xf32, #tpu.memory_space<vmem>>, vector<32x128xf32>
    %390 = arith.truncf %389 : vector<32x128xf32> to vector<32x128xbf16>
    %c0_90 = arith.constant 0 : index
    %c0_91 = arith.constant 0 : index
    %391 = vector.load %arg7[%c0_90, %c0_91] : memref<128x128xbf16, #tpu.memory_space<vmem>>, vector<128x128xbf16>
    %cst_92 = arith.constant dense<0.000000e+00> : vector<32x128xf32>
    %392 = tpu.matmul %390, %391, %cst_92 {dimension_numbers = #tpu.dot_dimension_numbers<[1], [0], [0], [1], [0, 0, 1, 1], [], []>} : vector<32x128xbf16>, vector<128x128xbf16>, vector<32x128xf32> -> vector<32x128xf32>
    %c0_93 = arith.constant 0 : index
    %c0_94 = arith.constant 0 : index
    %393 = vector.load %arg8[%c0_93, %c0_94] : memref<1x128xf32, #tpu.memory_space<vmem>>, vector<1x128xf32>
    %394 = vector.broadcast %393 : vector<1x128xf32> to vector<32x128xf32>
    %395 = arith.addf %392, %394 : vector<32x128xf32>
    %c0_95 = arith.constant 0 : index
    %c0_96 = arith.constant 0 : index
    %396 = vector.load %arg9[%c0_95, %c0_96] : memref<32x128xf32, #tpu.memory_space<vmem>>, vector<32x128xf32>
    tpu.vector_store %arg9[%c0_95, %c0_96], %395 {strides = array<i32>} : memref<32x128xf32, #tpu.memory_space<vmem>>, vector<32x128xf32>,
    return
  }
}

</mosaic_0001>

<llo_original>
// kernel: tpu_custom_call.1
$region0: #{tpu_custom_call.1}
  #allocation0 [shape = 'u32[]', space=smem, size = 0x4, offset = 0x4, fixed_abs, tag = 'smem constant byte address 0x4 - core index']
  #allocation1 [shape = 'u32[144,128]{1,0:T(1,128)}', space=vmem, size = 0x12000, scoped, tag = 'internal scratch']
  #allocation2 [shape = 'f32[64,384]{1,0:T(8,128)}', space=vmem, size = 0x18000, scoped, tag = 'scratch operand']
  #allocation3 [shape = 'f32[32,128]{1,0:T(8,128)}', space=vmem, size = 0x4000, scoped, tag = 'scratch operand']
  %s0 = inlined_call_operand.vmem [shape: bf16[64,8], index: 0, kind: input, shape index: {}]
  %s1 = inlined_call_operand.vmem [shape: bf16[8,384], index: 1, kind: input, shape index: {}]
  %s2 = inlined_call_operand.vmem [shape: f32[1,384], index: 2, kind: input, shape index: {}]
  %s3 = inlined_call_operand.hbm [shape: bf16[128,384], index: 3, kind: input, shape index: {}]
  %s4 = inlined_call_operand.vmem [shape: f32[1,128], index: 4, kind: input, shape index: {}]
  %s5 = inlined_call_operand.hbm [shape: bf16[128,768], index: 5, kind: input, shape index: {}]
  %s6 = inlined_call_operand.vmem [shape: f32[1,384], index: 6, kind: input, shape index: {}]
  %s7 = inlined_call_operand.hbm [shape: bf16[128,128], index: 7, kind: input, shape index: {}]
  %s8 = inlined_call_operand.vmem [shape: f32[1,128], index: 8, kind: input, shape index: {}]
  %s9 = inlined_call_operand.hbm [shape: f32[32,128], index: 9, kind: output, shape index: {}]
  %s10 = sld [smem:[#allocation0]]
  $region58: #{tpu_custom_call.1} parent=0
    _
  %s12 = ssub.s32 1, %s10
  %s13 = scalar_select 0, %s12, %s10
  $region1: #{tpu_custom_call.1} parent=0
    #allocation4 [shape = 'u8[98304]{0}', space=vmem, size = 0x18000, scoped, tag = 'input window, operand 3, single buffered']
    #allocation5 [shape = 's32[1]{0}', space=sflag, size = 0x4, scoped, tag = 'scoped memory for tpu_custom_call.1']
    #allocation6 [shape = 's32[1]{0}', space=sflag, size = 0x4, scoped, tag = 'scoped memory for tpu_custom_call.1']
    #allocation7 [shape = 'u8[196608]{0}', space=vmem, size = 0x30000, scoped, tag = 'input window, operand 5, single buffered']
    #allocation8 [shape = 's32[1]{0}', space=sflag, size = 0x4, scoped, tag = 'scoped memory for tpu_custom_call.1']
    #allocation9 [shape = 'u8[32768]{0}', space=vmem, size = 0x8000, scoped, tag = 'input window, operand 7, single buffered']
    #allocation10 [shape = 'u8[16384]{0}', space=vmem, size = 0x4000, scoped, tag = 'output window, operand 0, single buffered']
    %14 = vsyncpa [#allocation5], 0
    %15 = vsyncpa [#allocation8], 0
    %16 = vsyncpa [#allocation6], 0
    // Predicated region
    $region2: #{tpu_custom_call.1} parent=1 // pred_check
      _
    $region3: #{tpu_custom_call.1} parent=1 // pred_check_branch
      %18 = sbr.rel (0) target = $region5
    $region4: #{tpu_custom_call.1} parent=1 // pred_region
      _
    $region5: #{tpu_custom_call.1} parent=1 // pred_fallthru
      _
    // Predicated region
    $region6: #{tpu_custom_call.1} parent=1 // pred_check
      _
    $region7: #{tpu_custom_call.1} parent=1 // pred_check_branch
      %20 = sbr.rel (0) target = $region9
    $region8: #{tpu_custom_call.1} parent=1 // pred_region
      _
    $region9: #{tpu_custom_call.1} parent=1 // pred_fallthru
      _
    // Predicated region
    $region10: #{tpu_custom_call.1} parent=1 // pred_check
      _
    $region11: #{tpu_custom_call.1} parent=1 // pred_check_branch
      %22 = sbr.rel (0) target = $region13
    $region12: #{tpu_custom_call.1} parent=1 // pred_region
      _
    $region13: #{tpu_custom_call.1} parent=1 // pred_fallthru
      _
    // Predicated region
    $region14: #{tpu_custom_call.1} parent=1 // pred_check
      _
    $region15: #{tpu_custom_call.1} parent=1 // pred_check_branch
      %24 = sbr.rel (0) target = $region17
    $region16: #{tpu_custom_call.1} parent=1 // pred_region
      %s26 = ssub.s32 3072, 3072
      %27 = vsyncadd [#allocation5], %s26
      %s28 = sshll.u32 [#allocation4], 4
      %s29 = int_to_ptr.vmem [resolvable:$true] %s28
      %34 = dma.hbm_to_vmem [thread:$0]  %s3, 3072, %s29, [#allocation5], 192, 192, 12
    $region17: #{tpu_custom_call.1} parent=1 // pred_fallthru
      _
    // Predicated region
    $region18: #{tpu_custom_call.1} parent=1 // pred_check
      _
    $region19: #{tpu_custom_call.1} parent=1 // pred_check_branch
      %36 = sbr.rel (0) target = $region21
    $region20: #{tpu_custom_call.1} parent=1 // pred_region
      _
    $region21: #{tpu_custom_call.1} parent=1 // pred_fallthru
      _
    // Predicated region
    $region22: #{tpu_custom_call.1} parent=1 // pred_check
      _
    $region23: #{tpu_custom_call.1} parent=1 // pred_check_branch
      %38 = sbr.rel (0) target = $region25
    $region24: #{tpu_custom_call.1} parent=1 // pred_region
      %s40 = ssub.s32 6144, 6144
      %41 = vsyncadd [#allocation8], %s40
      %s42 = sshll.u32 [#allocation7], 4
      %s43 = int_to_ptr.vmem [resolvable:$true] %s42
      %48 = dma.hbm_to_vmem [thread:$0]  %s5, 6144, %s43, [#allocation8], 384, 384, 24
    $region25: #{tpu_custom_call.1} parent=1 // pred_fallthru
      _
    // Predicated region
    $region26: #{tpu_custom_call.1} parent=1 // pred_check
      _
    $region27: #{tpu_custom_call.1} parent=1 // pred_check_branch
      %50 = sbr.rel (0) target = $region29
    $region28: #{tpu_custom_call.1} parent=1 // pred_region
      _
    $region29: #{tpu_custom_call.1} parent=1 // pred_fallthru
      _
    // Predicated region
    $region30: #{tpu_custom_call.1} parent=1 // pred_check
      _
    $region31: #{tpu_custom_call.1} parent=1 // pred_check_branch
      %52 = sbr.rel (0) target = $region33
    $region32: #{tpu_custom_call.1} parent=1 // pred_region
      %s54 = ssub.s32 1024, 1024
      %55 = vsyncadd [#allocation8], %s54
      %s56 = sshll.u32 [#allocation9], 4
      %s57 = int_to_ptr.vmem [resolvable:$true] %s56
      %62 = dma.hbm_to_vmem [thread:$0]  %s7, 1024, %s57, [#allocation8], 64, 64, 4
    $region33: #{tpu_custom_call.1} parent=1 // pred_fallthru
      _
    // Predicated region
    $region34: #{tpu_custom_call.1} parent=1 // pred_check
      _
    $region35: #{tpu_custom_call.1} parent=1 // pred_check_branch
      %64 = sbr.rel (0) target = $region37
    $region36: #{tpu_custom_call.1} parent=1 // pred_region
      _
    $region37: #{tpu_custom_call.1} parent=1 // pred_fallthru
      _
    // Predicated region
    $region38: #{tpu_custom_call.1} parent=1 // pred_check
      _
    $region39: #{tpu_custom_call.1} parent=1 // pred_check_branch
      %66 = sbr.rel (0) target = $region41
    $region40: #{tpu_custom_call.1} parent=1 // pred_region
      %67 = dma.done [#allocation5], 3072
    $region41: #{tpu_custom_call.1} parent=1 // pred_fallthru
      _
    // Predicated region
    $region42: #{tpu_custom_call.1} parent=1 // pred_check
      _
    $region43: #{tpu_custom_call.1} parent=1 // pred_check_branch
      %69 = sbr.rel (0) target = $region45
    $region44: #{tpu_custom_call.1} parent=1 // pred_region
      %70 = dma.done [#allocation8], 6144
    $region45: #{tpu_custom_call.1} parent=1 // pred_fallthru
      _
    // Predicated region
    $region46: #{tpu_custom_call.1} parent=1 // pred_check
      _
    $region47: #{tpu_custom_call.1} parent=1 // pred_check_branch
      %72 = sbr.rel (0) target = $region49
    $region48: #{tpu_custom_call.1} parent=1 // pred_region
      %73 = dma.done [#allocation8], 1024
    $region49: #{tpu_custom_call.1} parent=1 // pred_fallthru
      _
    %v75 = vld [vmem:[#allocation4] sm:$0xff]
    %v76 = vld [vmem:[#allocation4 + $0x8] sm:$0xf]
    %v77 = vld [vmem:[#allocation4 + $0xc] sm:$0xff]
    %v78 = vld [vmem:[#allocation4 + $0x14] sm:$0xf]
    %v79 = vld [vmem:[#allocation4 + $0x18] sm:$0xff]
    %v80 = vld [vmem:[#allocation4 + $0x20] sm:$0xf]
    %v81 = vld [vmem:[#allocation4 + $0x24] sm:$0xff]
    %v82 = vld [vmem:[#allocation4 + $0x2c] sm:$0xf]
    %v83 = vld [vmem:[#allocation4 + $0x30] sm:$0xff]
    %v84 = vld [vmem:[#allocation4 + $0x38] sm:$0xf]
    %v85 = vld [vmem:[#allocation4 + $0x3c] sm:$0xff]
    %v86 = vld [vmem:[#allocation4 + $0x44] sm:$0xf]
    %v87 = vld [vmem:[#allocation4 + $0x48] sm:$0xff]
    %v88 = vld [vmem:[#allocation4 + $0x50] sm:$0xf]
    %v89 = vld [vmem:[#allocation4 + $0x54] sm:$0xff]
    %v90 = vld [vmem:[#allocation4 + $0x5c] sm:$0xf]
    %v91 = vld [vmem:[#allocation4 + $0x60] sm:$0xff]
    %v92 = vld [vmem:[#allocation4 + $0x68] sm:$0xf]
    %v93 = vld [vmem:[#allocation4 + $0x6c] sm:$0xff]
    %v94 = vld [vmem:[#allocation4 + $0x74] sm:$0xf]
    %v95 = vld [vmem:[#allocation4 + $0x78] sm:$0xff]
    %v96 = vld [vmem:[#allocation4 + $0x80] sm:$0xf]
    %v97 = vld [vmem:[#allocation4 + $0x84] sm:$0xff]
    %v98 = vld [vmem:[#allocation4 + $0x8c] sm:$0xf]
    %v99 = vld [vmem:[#allocation4 + $0x90] sm:$0xff]
    %v100 = vld [vmem:[#allocation4 + $0x98] sm:$0xf]
    %v101 = vld [vmem:[#allocation4 + $0x9c] sm:$0xff]
    %v102 = vld [vmem:[#allocation4 + $0xa4] sm:$0xf]
    %v103 = vld [vmem:[#allocation4 + $0xa8] sm:$0xff]
    %v104 = vld [vmem:[#allocation4 + $0xb0] sm:$0xf]
    %v105 = vld [vmem:[#allocation4 + $0xb4] sm:$0xff]
    %v106 = vld [vmem:[#allocation4 + $0xbc] sm:$0xf]
    %v107 = vld [vmem:[#allocation7] sm:$0xff]
    %v108 = vld [vmem:[#allocation7 + $0x8] sm:$0xff]
    %v109 = vld [vmem:[#allocation7 + $0x10] sm:$0xff]
    %v110 = vld [vmem:[#allocation7 + $0x18] sm:$0xff]
    %v111 = vld [vmem:[#allocation7 + $0x20] sm:$0xff]
    %v112 = vld [vmem:[#allocation7 + $0x28] sm:$0xff]
    %v113 = vld [vmem:[#allocation7 + $0x30] sm:$0xff]
    %v114 = vld [vmem:[#allocation7 + $0x38] sm:$0xff]
    %v115 = vld [vmem:[#allocation7 + $0x40] sm:$0xff]
    %v116 = vld [vmem:[#allocation7 + $0x48] sm:$0xff]
    %v117 = vld [vmem:[#allocation7 + $0x50] sm:$0xff]
    %v118 = vld [vmem:[#allocation7 + $0x58] sm:$0xff]
    %v119 = vld [vmem:[#allocation7 + $0x60] sm:$0xff]
    %v120 = vld [vmem:[#allocation7 + $0x68] sm:$0xff]
    %v121 = vld [vmem:[#allocation7 + $0x70] sm:$0xff]
    %v122 = vld [vmem:[#allocation7 + $0x78] sm:$0xff]
    %v123 = vld [vmem:[#allocation7 + $0x80] sm:$0xff]
    %v124 = vld [vmem:[#allocation7 + $0x88] sm:$0xff]
    %v125 = vld [vmem:[#allocation7 + $0x90] sm:$0xff]
    %v126 = vld [vmem:[#allocation7 + $0x98] sm:$0xff]
    %v127 = vld [vmem:[#allocation7 + $0xa0] sm:$0xff]
    %v128 = vld [vmem:[#allocation7 + $0xa8] sm:$0xff]
    %v129 = vld [vmem:[#allocation7 + $0xb0] sm:$0xff]
    %v130 = vld [vmem:[#allocation7 + $0xb8] sm:$0xff]
    %v131 = vld [vmem:[#allocation7 + $0xc0] sm:$0xff]
    %v132 = vld [vmem:[#allocation7 + $0xc8] sm:$0xff]
    %v133 = vld [vmem:[#allocation7 + $0xd0] sm:$0xff]
    %v134 = vld [vmem:[#allocation7 + $0xd8] sm:$0xff]
    %v135 = vld [vmem:[#allocation7 + $0xe0] sm:$0xff]
    %v136 = vld [vmem:[#allocation7 + $0xe8] sm:$0xff]
    %v137 = vld [vmem:[#allocation7 + $0xf0] sm:$0xff]
    %v138 = vld [vmem:[#allocation7 + $0xf8] sm:$0xff]
    %v139 = vld [vmem:[#allocation7 + $0x100] sm:$0xff]
    %v140 = vld [vmem:[#allocation7 + $0x108] sm:$0xff]
    %v141 = vld [vmem:[#allocation7 + $0x110] sm:$0xff]
    %v142 = vld [vmem:[#allocation7 + $0x118] sm:$0xff]
    %v143 = vld [vmem:[#allocation7 + $0x120] sm:$0xff]
    %v144 = vld [vmem:[#allocation7 + $0x128] sm:$0xff]
    %v145 = vld [vmem:[#allocation7 + $0x130] sm:$0xff]
    %v146 = vld [vmem:[#allocation7 + $0x138] sm:$0xff]
    %v147 = vld [vmem:[#allocation7 + $0x140] sm:$0xff]
    %v148 = vld [vmem:[#allocation7 + $0x148] sm:$0xff]
    %v149 = vld [vmem:[#allocation7 + $0x150] sm:$0xff]
    %v150 = vld [vmem:[#allocation7 + $0x158] sm:$0xff]
    %v151 = vld [vmem:[#allocation7 + $0x160] sm:$0xff]
    %v152 = vld [vmem:[#allocation7 + $0x168] sm:$0xff]
    %v153 = vld [vmem:[#allocation7 + $0x170] sm:$0xff]
    %v154 = vld [vmem:[#allocation7 + $0x178] sm:$0xff]
    %v155 = vld [vmem:[%s4] sm:$0x1]
    %v157 = vlaneseq
    %v158 = vshrl.u32 %v157, 7
    %v159 = vsub.s32 0, %v158
    %v160 = vrot.slane %v155, %v159
    %v162 = vld [vmem:[%s6] sm:$0x7]
    %v164 = vlaneseq
    %v165 = vshrl.u32 %v164, 7
    %v166 = vsub.s32 0, %v165
    %v167 = vrot.slane %v162, %v166
    %v168 = vlaneseq
    %v169 = vshrl.u32 %v168, 7
    %v170 = vsub.s32 1, %v169
    %v171 = vrot.slane %v162, %v170
    %v172 = vlaneseq
    %v173 = vshrl.u32 %v172, 7
    %v174 = vsub.s32 2, %v173
    %v175 = vrot.slane %v162, %v174
    %v179 = vld [vmem:[%s0] sm:$0xf]
    %v180 = vld [vmem:[%s0 + $0x4] sm:$0xf]
    %v181 = vld [vmem:[%s0 + $0x8] sm:$0xf]
    %v182 = vld [vmem:[%s0 + $0xc] sm:$0xf]
    %v183 = vld [vmem:[%s0 + $0x10] sm:$0xf]
    %v184 = vld [vmem:[%s0 + $0x14] sm:$0xf]
    %v185 = vld [vmem:[%s0 + $0x18] sm:$0xf]
    %v186 = vld [vmem:[%s0 + $0x1c] sm:$0xf]
    %v187 = vld [vmem:[%s1] sm:$0xff]
    %v188 = vld [vmem:[%s1 + $0x8] sm:$0xf]
    %v189 = vld [vmem:[%s2] sm:$0x7]
    %v191 = vlaneseq
    %v192 = vshrl.u32 %v191, 7
    %v193 = vsub.s32 0, %v192
    %v194 = vrot.slane %v189, %v193
    %v195 = vlaneseq
    %v196 = vshrl.u32 %v195, 7
    %v197 = vsub.s32 1, %v196
    %v198 = vrot.slane %v189, %v197
    %v199 = vlaneseq
    %v200 = vshrl.u32 %v199, 7
    %v201 = vsub.s32 2, %v200
    %v202 = vrot.slane %v189, %v201
    %v214 = vunpack.c.l.b16 %v179
    %v215 = vunpack.c.l.b16 %v180
    %v216 = vunpack.c.l.b16 %v181
    %v217 = vunpack.c.l.b16 %v182
    %v218 = vunpack.c.l.b16 %v183
    %v219 = vunpack.c.l.b16 %v184
    %v220 = vunpack.c.l.b16 %v185
    %v221 = vunpack.c.l.b16 %v186
    %v222 = vpack.c.b16 %v215, %v214
    %v223 = vpack.c.b16 %v217, %v216
    %v224 = vpack.c.b16 %v219, %v218
    %v225 = vpack.c.b16 %v221, %v220
    %v228 = vunpack.c.l.b16 %v187
    %v229 = vunpack.c.h.b16 %v187
    %v230 = vunpack.c.l.b16 %v188
    %v231 = vpack.c.b16 %v228, %v228
    %v232 = vpack.c.b16 %v229, %v229
    %v233 = vpack.c.b16 %v230, %v230
    %vm234 = vcmask 64512
    %v236 = vsel %vm234, %v222, 0
    %v239 = vsel %vm234, %v223, 0
    %v242 = vsel %vm234, %v224, 0
    %v245 = vsel %vm234, %v225, 0
    %vm247 = vcmask 1043456
    %v249 = vsel %vm247, %v231, 0
    %v252 = vsel %vm247, %v232, 0
    %v255 = vsel %vm247, %v233, 0
    %257 = vmatprep.subr.bf16.mxu0 0
    %258 = vmatpush1.bf16.msra.mxu0 0
    %259 = vmatprep.subr.bf16.mxu0 0
    %260 = vmatpush1.bf16.msra.mxu0 0
    %261 = vmatprep.subr.bf16.mxu0 0
    %262 = vmatpush1.bf16.msra.mxu0 0
    %263 = vmatprep.subr.bf16.mxu0 0
    %264 = vmatpush1.bf16.msra.mxu0 0
    %265 = vmatprep.subr.bf16.mxu0 0
    %266 = vmatpush1.bf16.msra.mxu0 0
    %267 = vmatprep.subr.bf16.mxu0 0
    %268 = vmatpush1.bf16.msra.mxu0 0
    %269 = vmatprep.subr.bf16.mxu0 0
    %270 = vmatpush1.bf16.msra.mxu0 0
    %271 = vmatprep.subr.bf16.mxu0 %v252
    %272 = vmatpush1.bf16.msra.mxu0 %v249
    %273 = vmatprep.subr.bf16.mxu0 0
    %274 = vmatpush2.bf16.msra.mxu0 0
    %275 = vmatprep.subr.bf16.mxu0 0
    %276 = vmatpush2.bf16.msra.mxu0 0
    %277 = vmatprep.subr.bf16.mxu0 0
    %278 = vmatpush2.bf16.msra.mxu0 0
    %279 = vmatprep.subr.bf16.mxu0 0
    %280 = vmatpush2.bf16.msra.mxu0 0
    %281 = vmatprep.subr.bf16.mxu0 0
    %282 = vmatpush2.bf16.msra.mxu0 0
    %283 = vmatprep.subr.bf16.mxu0 0
    %284 = vmatpush2.bf16.msra.mxu0 0
    %285 = vmatprep.subr.bf16.mxu0 0
    %286 = vmatpush2.bf16.msra.mxu0 0
    %287 = vmatprep.subr.bf16.mxu0 0
    %288 = vmatpush2.bf16.msra.mxu0 0
    %289 = vmatprep.mubr.bf16.mxu0 0
    %290 = vmatmul.mubr.bf16.gmra.mxu0 %v236
    %v291 = vpop.f32.mrf.mxu0
    %v292 = vadd.f32 %v194, %v291
    %v293 = vpop.f32.mrf.mxu0
    %v294 = vadd.f32 %v198, %v293
    %v295 = vpop.f32.mrf.mxu0
    %v296 = vadd.f32 %v194, %v295
    %v297 = vpop.f32.mrf.mxu0
    %v298 = vadd.f32 %v198, %v297
    %299 = vmatprep.mubr.bf16.mxu0 0
    %300 = vmatmul.mubr.bf16.gmra.mxu0 %v239
    %v301 = vpop.f32.mrf.mxu0
    %v302 = vadd.f32 %v194, %v301
    %v303 = vpop.f32.mrf.mxu0
    %v304 = vadd.f32 %v198, %v303
    %v305 = vpop.f32.mrf.mxu0
    %v306 = vadd.f32 %v194, %v305
    %v307 = vpop.f32.mrf.mxu0
    %v308 = vadd.f32 %v198, %v307
    %309 = vmatprep.mubr.bf16.mxu0 0
    %310 = vmatmul.mubr.bf16.gmra.mxu0 %v242
    %v311 = vpop.f32.mrf.mxu0
    %v312 = vadd.f32 %v194, %v311
    %v313 = vpop.f32.mrf.mxu0
    %v314 = vadd.f32 %v198, %v313
    %v315 = vpop.f32.mrf.mxu0
    %v316 = vadd.f32 %v194, %v315
    %v317 = vpop.f32.mrf.mxu0
    %v318 = vadd.f32 %v198, %v317
    %319 = vmatprep.mubr.bf16.mxu0 0
    %320 = vmatmul.mubr.bf16.gmra.mxu0 %v245
    %v321 = vpop.f32.mrf.mxu0
    %v322 = vadd.f32 %v194, %v321
    %v323 = vpop.f32.mrf.mxu0
    %v324 = vadd.f32 %v198, %v323
    %v325 = vpop.f32.mrf.mxu0
    %v326 = vadd.f32 %v194, %v325
    %v327 = vpop.f32.mrf.mxu0
    %v328 = vadd.f32 %v198, %v327
    %329 = vdwg.mxu0
    %330 = vmatprep.subr.bf16.mxu0 0
    %331 = vmatpush1.bf16.msra.mxu0 0
    %332 = vmatprep.subr.bf16.mxu0 0
    %333 = vmatpush1.bf16.msra.mxu0 0
    %334 = vmatprep.subr.bf16.mxu0 0
    %335 = vmatpush1.bf16.msra.mxu0 0
    %336 = vmatprep.subr.bf16.mxu0 0
    %337 = vmatpush1.bf16.msra.mxu0 0
    %338 = vmatprep.subr.bf16.mxu0 0
    %339 = vmatpush1.bf16.msra.mxu0 0
    %340 = vmatprep.subr.bf16.mxu0 0
    %341 = vmatpush1.bf16.msra.mxu0 0
    %342 = vmatprep.subr.bf16.mxu0 0
    %343 = vmatpush1.bf16.msra.mxu0 0
    %344 = vmatprep.subr.bf16.mxu0 0
    %345 = vmatpush1.bf16.msra.mxu0 %v255
    %346 = vmatprep.subr.bf16.mxu0 0
    %347 = vmatpush2.bf16.msra.mxu0 0
    %348 = vmatprep.subr.bf16.mxu0 0
    %349 = vmatpush2.bf16.msra.mxu0 0
    %350 = vmatprep.subr.bf16.mxu0 0
    %351 = vmatpush2.bf16.msra.mxu0 0
    %352 = vmatprep.subr.bf16.mxu0 0
    %353 = vmatpush2.bf16.msra.mxu0 0
    %354 = vmatprep.subr.bf16.mxu0 0
    %355 = vmatpush2.bf16.msra.mxu0 0
    %356 = vmatprep.subr.bf16.mxu0 0
    %357 = vmatpush2.bf16.msra.mxu0 0
    %358 = vmatprep.subr.bf16.mxu0 0
    %359 = vmatpush2.bf16.msra.mxu0 0
    %360 = vmatprep.subr.bf16.mxu0 0
    %361 = vmatpush2.bf16.msra.mxu0 0
    %362 = vmatprep.mubr.bf16.mxu0 0
    %363 = vmatmul.mubr.bf16.gmra.mxu0 %v236
    %v364 = vpop.f32.mrf.mxu0
    %v365 = vadd.f32 %v202, %v364
    %v366 = vpop.f32.mrf.mxu0
    %v367 = vpop.f32.mrf.mxu0
    %v368 = vadd.f32 %v202, %v367
    %v369 = vpop.f32.mrf.mxu0
    %370 = vmatprep.mubr.bf16.mxu0 0
    %371 = vmatmul.mubr.bf16.gmra.mxu0 %v239
    %v372 = vpop.f32.mrf.mxu0
    %v373 = vadd.f32 %v202, %v372
    %v374 = vpop.f32.mrf.mxu0
    %v375 = vpop.f32.mrf.mxu0
    %v376 = vadd.f32 %v202, %v375
    %v377 = vpop.f32.mrf.mxu0
    %378 = vmatprep.mubr.bf16.mxu0 0
    %379 = vmatmul.mubr.bf16.gmra.mxu0 %v242
    %v380 = vpop.f32.mrf.mxu0
    %v381 = vadd.f32 %v202, %v380
    %v382 = vpop.f32.mrf.mxu0
    %v383 = vpop.f32.mrf.mxu0
    %v384 = vadd.f32 %v202, %v383
    %v385 = vpop.f32.mrf.mxu0
    %386 = vmatprep.mubr.bf16.mxu0 0
    %387 = vmatmul.mubr.bf16.gmra.mxu0 %v245
    %v388 = vpop.f32.mrf.mxu0
    %v389 = vadd.f32 %v202, %v388
    %v390 = vpop.f32.mrf.mxu0
    %v391 = vpop.f32.mrf.mxu0
    %v392 = vadd.f32 %v202, %v391
    %v393 = vpop.f32.mrf.mxu0
    %394 = vdwg.mxu0
    %395 = vst [vmem:[#allocation2] sm:$0xff] %v292
    %396 = vst [vmem:[#allocation2 + $0x8] sm:$0xff] %v294
    %397 = vst [vmem:[#allocation2 + $0x10] sm:$0xff] %v365
    %398 = vst [vmem:[#allocation2 + $0x18] sm:$0xff] %v296
    %399 = vst [vmem:[#allocation2 + $0x20] sm:$0xff] %v298
    %400 = vst [vmem:[#allocation2 + $0x28] sm:$0xff] %v368
    %401 = vst [vmem:[#allocation2 + $0x30] sm:$0xff] %v302
    %402 = vst [vmem:[#allocation2 + $0x38] sm:$0xff] %v304
    %403 = vst [vmem:[#allocation2 + $0x40] sm:$0xff] %v373
    %404 = vst [vmem:[#allocation2 + $0x48] sm:$0xff] %v306
    %405 = vst [vmem:[#allocation2 + $0x50] sm:$0xff] %v308
    %406 = vst [vmem:[#allocation2 + $0x58] sm:$0xff] %v376
    %407 = vst [vmem:[#allocation2 + $0x60] sm:$0xff] %v312
    %408 = vst [vmem:[#allocation2 + $0x68] sm:$0xff] %v314
    %409 = vst [vmem:[#allocation2 + $0x70] sm:$0xff] %v381
    %410 = vst [vmem:[#allocation2 + $0x78] sm:$0xff] %v316
    %411 = vst [vmem:[#allocation2 + $0x80] sm:$0xff] %v318
    %412 = vst [vmem:[#allocation2 + $0x88] sm:$0xff] %v384
    %413 = vst [vmem:[#allocation2 + $0x90] sm:$0xff] %v322
    %414 = vst [vmem:[#allocation2 + $0x98] sm:$0xff] %v324
    %415 = vst [vmem:[#allocation2 + $0xa0] sm:$0xff] %v389
    %416 = vst [vmem:[#allocation2 + $0xa8] sm:$0xff] %v326
    %417 = vst [vmem:[#allocation2 + $0xb0] sm:$0xff] %v328
    %418 = vst [vmem:[#allocation2 + $0xb8] sm:$0xff] %v392
    %s419 = smul.u32 0, 3
    %s420 = smul.addr %s419, 8
    %s421 = scalar_lea.vmem [#allocation2], %s420
    %v422 = vld [vmem:[%s421] sm:$0xff]
    %v423 = vld [vmem:[%s421 + $0x8] sm:$0xff]
    %v424 = vld [vmem:[%s421 + $0x10] sm:$0xff]
    %v457 = vunpack.c.l.b16 %v75
    %v458 = vunpack.c.h.b16 %v75
    %v459 = vunpack.c.l.b16 %v76
    %v460 = vunpack.c.l.b16 %v77
    %v461 = vunpack.c.h.b16 %v77
    %v462 = vunpack.c.l.b16 %v78
    %v463 = vunpack.c.l.b16 %v79
    %v464 = vunpack.c.h.b16 %v79
    %v465 = vunpack.c.l.b16 %v80
    %v466 = vunpack.c.l.b16 %v81
    %v467 = vunpack.c.h.b16 %v81
    %v468 = vunpack.c.l.b16 %v82
    %v469 = vunpack.c.l.b16 %v83
    %v470 = vunpack.c.h.b16 %v83
    %v471 = vunpack.c.l.b16 %v84
    %v472 = vunpack.c.l.b16 %v85
    %v473 = vunpack.c.h.b16 %v85
    %v474 = vunpack.c.l.b16 %v86
    %v475 = vunpack.c.l.b16 %v87
    %v476 = vunpack.c.h.b16 %v87
    %v477 = vunpack.c.l.b16 %v88
    %v478 = vunpack.c.l.b16 %v89
    %v479 = vunpack.c.h.b16 %v89
    %v480 = vunpack.c.l.b16 %v90
    %v481 = vunpack.c.l.b16 %v91
    %v482 = vunpack.c.h.b16 %v91
    %v483 = vunpack.c.l.b16 %v92
    %v484 = vunpack.c.l.b16 %v93
    %v485 = vunpack.c.h.b16 %v93
    %v486 = vunpack.c.l.b16 %v94
    %v487 = vunpack.c.l.b16 %v95
    %v488 = vunpack.c.h.b16 %v95
    %v489 = vunpack.c.l.b16 %v96
    %v490 = vunpack.c.l.b16 %v97
    %v491 = vunpack.c.h.b16 %v97
    %v492 = vunpack.c.l.b16 %v98
    %v493 = vunpack.c.l.b16 %v99
    %v494 = vunpack.c.h.b16 %v99
    %v495 = vunpack.c.l.b16 %v100
    %v496 = vunpack.c.l.b16 %v101
    %v497 = vunpack.c.h.b16 %v101
    %v498 = vunpack.c.l.b16 %v102
    %v499 = vunpack.c.l.b16 %v103
    %v500 = vunpack.c.h.b16 %v103
    %v501 = vunpack.c.l.b16 %v104
    %v502 = vunpack.c.l.b16 %v105
    %v503 = vunpack.c.h.b16 %v105
    %v504 = vunpack.c.l.b16 %v106
    %v505 = vpack.c.b16 %v460, %v457
    %v506 = vpack.c.b16 %v461, %v458
    %v507 = vpack.c.b16 %v462, %v459
    %v508 = vpack.c.b16 %v466, %v463
    %v509 = vpack.c.b16 %v467, %v464
    %v510 = vpack.c.b16 %v468, %v465
    %v511 = vpack.c.b16 %v472, %v469
    %v512 = vpack.c.b16 %v473, %v470
    %v513 = vpack.c.b16 %v474, %v471
    %v514 = vpack.c.b16 %v478, %v475
    %v515 = vpack.c.b16 %v479, %v476
    %v516 = vpack.c.b16 %v480, %v477
    %v517 = vpack.c.b16 %v484, %v481
    %v518 = vpack.c.b16 %v485, %v482
    %v519 = vpack.c.b16 %v486, %v483
    %v520 = vpack.c.b16 %v490, %v487
    %v521 = vpack.c.b16 %v491, %v488
    %v522 = vpack.c.b16 %v492, %v489
    %v523 = vpack.c.b16 %v496, %v493
    %v524 = vpack.c.b16 %v497, %v494
    %v525 = vpack.c.b16 %v498, %v495
    %v526 = vpack.c.b16 %v502, %v499
    %v527 = vpack.c.b16 %v503, %v500
    %v528 = vpack.c.b16 %v504, %v501
    %553 = vmatprep.subr.bf16.mxu0 %v527
    %554 = vmatpush1.bf16.msra.mxu0 %v526
    %555 = vmatprep.subr.bf16.mxu0 %v524
    %556 = vmatpush1.bf16.msra.mxu0 %v523
    %557 = vmatprep.subr.bf16.mxu0 %v521
    %558 = vmatpush1.bf16.msra.mxu0 %v520
    %559 = vmatprep.subr.bf16.mxu0 %v518
    %560 = vmatpush1.bf16.msra.mxu0 %v517
    %561 = vmatprep.subr.bf16.mxu0 %v515
    %562 = vmatpush1.bf16.msra.mxu0 %v514
    %563 = vmatprep.subr.bf16.mxu0 %v512
    %564 = vmatpush1.bf16.msra.mxu0 %v511
    %565 = vmatprep.subr.bf16.mxu0 %v509
    %566 = vmatpush1.bf16.msra.mxu0 %v508
    %567 = vmatprep.subr.bf16.mxu0 %v506
    %568 = vmatpush1.bf16.msra.mxu0 %v505
    %569 = vmatprep.subr.bf16.mxu0 0
    %570 = vmatpush2.bf16.msra.mxu0 0
    %571 = vmatprep.subr.bf16.mxu0 0
    %572 = vmatpush2.bf16.msra.mxu0 0
    %573 = vmatprep.subr.bf16.mxu0 0
    %574 = vmatpush2.bf16.msra.mxu0 0
    %575 = vmatprep.subr.bf16.mxu0 0
    %576 = vmatpush2.bf16.msra.mxu0 0
    %577 = vmatprep.subr.bf16.mxu0 0
    %578 = vmatpush2.bf16.msra.mxu0 0
    %579 = vmatprep.subr.bf16.mxu0 0
    %580 = vmatpush2.bf16.msra.mxu0 0
    %581 = vmatprep.subr.bf16.mxu0 0
    %582 = vmatpush2.bf16.msra.mxu0 0
    %583 = vmatprep.subr.bf16.mxu0 0
    %584 = vmatpush2.bf16.msra.mxu0 0
    %585 = vmatprep.mubr.bf16.mxu0 0
    %586 = vmatmul.mubr.bf16.gmra.mxu0 0
    %v587 = vpop.f32.mrf.mxu0
    %v588 = vadd.f32 0.0, %v587
    %v589 = vpop.f32.mrf.mxu0
    %v590 = vadd.f32 0.0, %v589
    %v591 = vpop.f32.mrf.mxu0
    %v592 = vpop.f32.mrf.mxu0
    %593 = vdwg.mxu0
    %594 = vmatprep.subr.bf16.mxu0 0
    %595 = vmatpush1.bf16.msra.mxu0 %v528
    %596 = vmatprep.subr.bf16.mxu0 0
    %597 = vmatpush1.bf16.msra.mxu0 %v525
    %598 = vmatprep.subr.bf16.mxu0 0
    %599 = vmatpush1.bf16.msra.mxu0 %v522
    %600 = vmatprep.subr.bf16.mxu0 0
    %601 = vmatpush1.bf16.msra.mxu0 %v519
    %602 = vmatprep.subr.bf16.mxu0 0
    %603 = vmatpush1.bf16.msra.mxu0 %v516
    %604 = vmatprep.subr.bf16.mxu0 0
    %605 = vmatpush1.bf16.msra.mxu0 %v513
    %606 = vmatprep.subr.bf16.mxu0 0
    %607 = vmatpush1.bf16.msra.mxu0 %v510
    %608 = vmatprep.subr.bf16.mxu0 0
    %609 = vmatpush1.bf16.msra.mxu0 %v507
    %610 = vmatprep.subr.bf16.mxu0 0
    %611 = vmatpush2.bf16.msra.mxu0 0
    %612 = vmatprep.subr.bf16.mxu0 0
    %613 = vmatpush2.bf16.msra.mxu0 0
    %614 = vmatprep.subr.bf16.mxu0 0
    %615 = vmatpush2.bf16.msra.mxu0 0
    %616 = vmatprep.subr.bf16.mxu0 0
    %617 = vmatpush2.bf16.msra.mxu0 0
    %618 = vmatprep.subr.bf16.mxu0 0
    %619 = vmatpush2.bf16.msra.mxu0 0
    %620 = vmatprep.subr.bf16.mxu0 0
    %621 = vmatpush2.bf16.msra.mxu0 0
    %622 = vmatprep.subr.bf16.mxu0 0
    %623 = vmatpush2.bf16.msra.mxu0 0
    %624 = vmatprep.subr.bf16.mxu0 0
    %625 = vmatpush2.bf16.msra.mxu0 0
    %626 = vmatprep.mubr.bf16.mxu0 0
    %627 = vmatmul.mubr.bf16.gmra.mxu0 0
    %v628 = vpop.f32.mrf.mxu0
    %v629 = vadd.f32 0.0, %v628
    %v630 = vpop.f32.mrf.mxu0
    %v631 = vpop.f32.mrf.mxu0
    %v632 = vpop.f32.mrf.mxu0
    %633 = vdwg.mxu0
    %v634 = vadd.f32 %v422, %v588
    %v635 = vxor.u32 %v634, 2147483648
    %v636 = vmul.f32 %v635, 1.442695
    %v637 = vpow.pop %v636
    %v638 = vadd.f32 %v637, 1.0
    %v639 = vrcp.pop %v638
    %v640 = vmul.f32 1.0, %v639
    %v641 = vadd.f32 %v423, %v590
    %v642 = vxor.u32 %v641, 2147483648
    %v643 = vmul.f32 %v642, 1.442695
    %v644 = vpow.pop %v643
    %v645 = vadd.f32 %v644, 1.0
    %v646 = vrcp.pop %v645
    %v647 = vmul.f32 1.0, %v646
    %v648 = vadd.f32 %v629, %v160
    %v649 = vmul.f32 %v640, %v648
    %v650 = vadd.f32 %v424, %v649
    %v651 = vtanh.pop %v650
    %v652 = vsub.f32 1.0, %v647
    %v653 = vmul.f32 %v652, %v651
    %v654 = vmul.f32 %v647, 0.0
    %v655 = vadd.f32 %v653, %v654
    %s656 = smul.u32 1, 3
    %s657 = smul.addr %s656, 8
    %s658 = scalar_lea.vmem [#allocation2], %s657
    %v659 = vld [vmem:[%s658] sm:$0xff]
    %v660 = vld [vmem:[%s658 + $0x8] sm:$0xff]
    %v661 = vld [vmem:[%s658 + $0x10] sm:$0xff]
    %v662 = vpack.c.bf16 %v655, %v655
    %663 = vmatprep.subr.bf16.mxu0 %v527
    %664 = vmatpush1.bf16.msra.mxu0 %v526
    %665 = vmatprep.subr.bf16.mxu0 %v524
    %666 = vmatpush1.bf16.msra.mxu0 %v523
    %667 = vmatprep.subr.bf16.mxu0 %v521
    %668 = vmatpush1.bf16.msra.mxu0 %v520
    %669 = vmatprep.subr.bf16.mxu0 %v518
    %670 = vmatpush1.bf16.msra.mxu0 %v517
    %671 = vmatprep.subr.bf16.mxu0 %v515
    %672 = vmatpush1.bf16.msra.mxu0 %v514
    %673 = vmatprep.subr.bf16.mxu0 %v512
    %674 = vmatpush1.bf16.msra.mxu0 %v511
    %675 = vmatprep.subr.bf16.mxu0 %v509
    %676 = vmatpush1.bf16.msra.mxu0 %v508
    %677 = vmatprep.subr.bf16.mxu0 %v506
    %678 = vmatpush1.bf16.msra.mxu0 %v505
    %679 = vmatprep.subr.bf16.mxu0 0
    %680 = vmatpush2.bf16.msra.mxu0 0
    %681 = vmatprep.subr.bf16.mxu0 0
    %682 = vmatpush2.bf16.msra.mxu0 0
    %683 = vmatprep.subr.bf16.mxu0 0
    %684 = vmatpush2.bf16.msra.mxu0 0
    %685 = vmatprep.subr.bf16.mxu0 0
    %686 = vmatpush2.bf16.msra.mxu0 0
    %687 = vmatprep.subr.bf16.mxu0 0
    %688 = vmatpush2.bf16.msra.mxu0 0
    %689 = vmatprep.subr.bf16.mxu0 0
    %690 = vmatpush2.bf16.msra.mxu0 0
    %691 = vmatprep.subr.bf16.mxu0 0
    %692 = vmatpush2.bf16.msra.mxu0 0
    %693 = vmatprep.subr.bf16.mxu0 0
    %694 = vmatpush2.bf16.msra.mxu0 0
    %695 = vmatprep.mubr.bf16.mxu0 0
    %696 = vmatmul.mubr.bf16.gmra.mxu0 %v662
    %v697 = vpop.f32.mrf.mxu0
    %v698 = vadd.f32 0.0, %v697
    %v699 = vpop.f32.mrf.mxu0
    %v700 = vadd.f32 0.0, %v699
    %v701 = vpop.f32.mrf.mxu0
    %v702 = vpop.f32.mrf.mxu0
    %703 = vdwg.mxu0
    %704 = vmatprep.subr.bf16.mxu0 0
    %705 = vmatpush1.bf16.msra.mxu0 %v528
    %706 = vmatprep.subr.bf16.mxu0 0
    %707 = vmatpush1.bf16.msra.mxu0 %v525
    %708 = vmatprep.subr.bf16.mxu0 0
    %709 = vmatpush1.bf16.msra.mxu0 %v522
    %710 = vmatprep.subr.bf16.mxu0 0
    %711 = vmatpush1.bf16.msra.mxu0 %v519
    %712 = vmatprep.subr.bf16.mxu0 0
    %713 = vmatpush1.bf16.msra.mxu0 %v516
    %714 = vmatprep.subr.bf16.mxu0 0
    %715 = vmatpush1.bf16.msra.mxu0 %v513
    %716 = vmatprep.subr.bf16.mxu0 0
    %717 = vmatpush1.bf16.msra.mxu0 %v510
    %718 = vmatprep.subr.bf16.mxu0 0
    %719 = vmatpush1.bf16.msra.mxu0 %v507
    %720 = vmatprep.subr.bf16.mxu0 0
    %721 = vmatpush2.bf16.msra.mxu0 0
    %722 = vmatprep.subr.bf16.mxu0 0
    %723 = vmatpush2.bf16.msra.mxu0 0
    %724 = vmatprep.subr.bf16.mxu0 0
    %725 = vmatpush2.bf16.msra.mxu0 0
    %726 = vmatprep.subr.bf16.mxu0 0
    %727 = vmatpush2.bf16.msra.mxu0 0
    %728 = vmatprep.subr.bf16.mxu0 0
    %729 = vmatpush2.bf16.msra.mxu0 0
    %730 = vmatprep.subr.bf16.mxu0 0
    %731 = vmatpush2.bf16.msra.mxu0 0
    %732 = vmatprep.subr.bf16.mxu0 0
    %733 = vmatpush2.bf16.msra.mxu0 0
    %734 = vmatprep.subr.bf16.mxu0 0
    %735 = vmatpush2.bf16.msra.mxu0 0
    %736 = vmatprep.mubr.bf16.mxu0 0
    %737 = vmatmul.mubr.bf16.gmra.mxu0 %v662
    %v738 = vpop.f32.mrf.mxu0
    %v739 = vadd.f32 0.0, %v738
    %v740 = vpop.f32.mrf.mxu0
    %v741 = vpop.f32.mrf.mxu0
    %v742 = vpop.f32.mrf.mxu0
    %743 = vdwg.mxu0
    %v744 = vadd.f32 %v659, %v698
    %v745 = vxor.u32 %v744, 2147483648
    %v746 = vmul.f32 %v745, 1.442695
    %v747 = vpow.pop %v746
    %v748 = vadd.f32 %v747, 1.0
    %v749 = vrcp.pop %v748
    %v750 = vmul.f32 1.0, %v749
    %v751 = vadd.f32 %v660, %v700
    %v752 = vxor.u32 %v751, 2147483648
    %v753 = vmul.f32 %v752, 1.442695
    %v754 = vpow.pop %v753
    %v755 = vadd.f32 %v754, 1.0
    %v756 = vrcp.pop %v755
    %v757 = vmul.f32 1.0, %v756
    %v758 = vadd.f32 %v739, %v160
    %v759 = vmul.f32 %v750, %v758
    %v760 = vadd.f32 %v661, %v759
    %v761 = vtanh.pop %v760
    %v762 = vsub.f32 1.0, %v757
    %v763 = vmul.f32 %v762, %v761
    %v764 = vmul.f32 %v757, %v655
    %v765 = vadd.f32 %v763, %v764
    %s766 = smul.u32 2, 3
    %s767 = smul.addr %s766, 8
    %s768 = scalar_lea.vmem [#allocation2], %s767
    %v769 = vld [vmem:[%s768] sm:$0xff]
    %v770 = vld [vmem:[%s768 + $0x8] sm:$0xff]
    %v771 = vld [vmem:[%s768 + $0x10] sm:$0xff]
    %v772 = vpack.c.bf16 %v765, %v765
    %773 = vmatprep.subr.bf16.mxu0 %v527
    %774 = vmatpush1.bf16.msra.mxu0 %v526
    %775 = vmatprep.subr.bf16.mxu0 %v524
    %776 = vmatpush1.bf16.msra.mxu0 %v523
    %777 = vmatprep.subr.bf16.mxu0 %v521
    %778 = vmatpush1.bf16.msra.mxu0 %v520
    %779 = vmatprep.subr.bf16.mxu0 %v518
    %780 = vmatpush1.bf16.msra.mxu0 %v517
    %781 = vmatprep.subr.bf16.mxu0 %v515
    %782 = vmatpush1.bf16.msra.mxu0 %v514
    %783 = vmatprep.subr.bf16.mxu0 %v512
    %784 = vmatpush1.bf16.msra.mxu0 %v511
    %785 = vmatprep.subr.bf16.mxu0 %v509
    %786 = vmatpush1.bf16.msra.mxu0 %v508
    %787 = vmatprep.subr.bf16.mxu0 %v506
    %788 = vmatpush1.bf16.msra.mxu0 %v505
    %789 = vmatprep.subr.bf16.mxu0 0
    %790 = vmatpush2.bf16.msra.mxu0 0
    %791 = vmatprep.subr.bf16.mxu0 0
    %792 = vmatpush2.bf16.msra.mxu0 0
    %793 = vmatprep.subr.bf16.mxu0 0
    %794 = vmatpush2.bf16.msra.mxu0 0
    %795 = vmatprep.subr.bf16.mxu0 0
    %796 = vmatpush2.bf16.msra.mxu0 0
    %797 = vmatprep.subr.bf16.mxu0 0
    %798 = vmatpush2.bf16.msra.mxu0 0
    %799 = vmatprep.subr.bf16.mxu0 0
    %800 = vmatpush2.bf16.msra.mxu0 0
    %801 = vmatprep.subr.bf16.mxu0 0
    %802 = vmatpush2.bf16.msra.mxu0 0
    %803 = vmatprep.subr.bf16.mxu0 0
    %804 = vmatpush2.bf16.msra.mxu0 0
    %805 = vmatprep.mubr.bf16.mxu0 0
    %806 = vmatmul.mubr.bf16.gmra.mxu0 %v772
    %v807 = vpop.f32.mrf.mxu0
    %v808 = vadd.f32 0.0, %v807
    %v809 = vpop.f32.mrf.mxu0
    %v810 = vadd.f32 0.0, %v809
    %v811 = vpop.f32.mrf.mxu0
    %v812 = vpop.f32.mrf.mxu0
    %813 = vdwg.mxu0
    %814 = vmatprep.subr.bf16.mxu0 0
    %815 = vmatpush1.bf16.msra.mxu0 %v528
    %816 = vmatprep.subr.bf16.mxu0 0
    %817 = vmatpush1.bf16.msra.mxu0 %v525
    %818 = vmatprep.subr.bf16.mxu0 0
    %819 = vmatpush1.bf16.msra.mxu0 %v522
    %820 = vmatprep.subr.bf16.mxu0 0
    %821 = vmatpush1.bf16.msra.mxu0 %v519
    %822 = vmatprep.subr.bf16.mxu0 0
    %823 = vmatpush1.bf16.msra.mxu0 %v516
    %824 = vmatprep.subr.bf16.mxu0 0
    %825 = vmatpush1.bf16.msra.mxu0 %v513
    %826 = vmatprep.subr.bf16.mxu0 0
    %827 = vmatpush1.bf16.msra.mxu0 %v510
    %828 = vmatprep.subr.bf16.mxu0 0
    %829 = vmatpush1.bf16.msra.mxu0 %v507
    %830 = vmatprep.subr.bf16.mxu0 0
    %831 = vmatpush2.bf16.msra.mxu0 0
    %832 = vmatprep.subr.bf16.mxu0 0
    %833 = vmatpush2.bf16.msra.mxu0 0
    %834 = vmatprep.subr.bf16.mxu0 0
    %835 = vmatpush2.bf16.msra.mxu0 0
    %836 = vmatprep.subr.bf16.mxu0 0
    %837 = vmatpush2.bf16.msra.mxu0 0
    %838 = vmatprep.subr.bf16.mxu0 0
    %839 = vmatpush2.bf16.msra.mxu0 0
    %840 = vmatprep.subr.bf16.mxu0 0
    %841 = vmatpush2.bf16.msra.mxu0 0
    %842 = vmatprep.subr.bf16.mxu0 0
    %843 = vmatpush2.bf16.msra.mxu0 0
    %844 = vmatprep.subr.bf16.mxu0 0
    %845 = vmatpush2.bf16.msra.mxu0 0
    %846 = vmatprep.mubr.bf16.mxu0 0
    %847 = vmatmul.mubr.bf16.gmra.mxu0 %v772
    %v848 = vpop.f32.mrf.mxu0
    %v849 = vadd.f32 0.0, %v848
    %v850 = vpop.f32.mrf.mxu0
    %v851 = vpop.f32.mrf.mxu0
    %v852 = vpop.f32.mrf.mxu0
    %853 = vdwg.mxu0
    %v854 = vadd.f32 %v769, %v808
    %v855 = vxor.u32 %v854, 2147483648
    %v856 = vmul.f32 %v855, 1.442695
    %v857 = vpow.pop %v856
    %v858 = vadd.f32 %v857, 1.0
    %v859 = vrcp.pop %v858
    %v860 = vmul.f32 1.0, %v859
    %v861 = vadd.f32 %v770, %v810
    %v862 = vxor.u32 %v861, 2147483648
    %v863 = vmul.f32 %v862, 1.442695
    %v864 = vpow.pop %v863
    %v865 = vadd.f32 %v864, 1.0
    %v866 = vrcp.pop %v865
    %v867 = vmul.f32 1.0, %v866
    %v868 = vadd.f32 %v849, %v160
    %v869 = vmul.f32 %v860, %v868
    %v870 = vadd.f32 %v771, %v869
    %v871 = vtanh.pop %v870
    %v872 = vsub.f32 1.0, %v867
    %v873 = vmul.f32 %v872, %v871
    %v874 = vmul.f32 %v867, %v765
    %v875 = vadd.f32 %v873, %v874
    %s876 = smul.u32 3, 3
    %s877 = smul.addr %s876, 8
    %s878 = scalar_lea.vmem [#allocation2], %s877
    %v879 = vld [vmem:[%s878] sm:$0xff]
    %v880 = vld [vmem:[%s878 + $0x8] sm:$0xff]
    %v881 = vld [vmem:[%s878 + $0x10] sm:$0xff]
    %v882 = vpack.c.bf16 %v875, %v875
    %883 = vmatprep.subr.bf16.mxu0 %v527
    %884 = vmatpush1.bf16.msra.mxu0 %v526
    %885 = vmatprep.subr.bf16.mxu0 %v524
    %886 = vmatpush1.bf16.msra.mxu0 %v523
    %887 = vmatprep.subr.bf16.mxu0 %v521
    %888 = vmatpush1.bf16.msra.mxu0 %v520
    %889 = vmatprep.subr.bf16.mxu0 %v518
    %890 = vmatpush1.bf16.msra.mxu0 %v517
    %891 = vmatprep.subr.bf16.mxu0 %v515
    %892 = vmatpush1.bf16.msra.mxu0 %v514
    %893 = vmatprep.subr.bf16.mxu0 %v512
    %894 = vmatpush1.bf16.msra.mxu0 %v511
    %895 = vmatprep.subr.bf16.mxu0 %v509
    %896 = vmatpush1.bf16.msra.mxu0 %v508
    %897 = vmatprep.subr.bf16.mxu0 %v506
    %898 = vmatpush1.bf16.msra.mxu0 %v505
    %899 = vmatprep.subr.bf16.mxu0 0
    %900 = vmatpush2.bf16.msra.mxu0 0
    %901 = vmatprep.subr.bf16.mxu0 0
    %902 = vmatpush2.bf16.msra.mxu0 0
    %903 = vmatprep.subr.bf16.mxu0 0
    %904 = vmatpush2.bf16.msra.mxu0 0
    %905 = vmatprep.subr.bf16.mxu0 0
    %906 = vmatpush2.bf16.msra.mxu0 0
    %907 = vmatprep.subr.bf16.mxu0 0
    %908 = vmatpush2.bf16.msra.mxu0 0
    %909 = vmatprep.subr.bf16.mxu0 0
    %910 = vmatpush2.bf16.msra.mxu0 0
    %911 = vmatprep.subr.bf16.mxu0 0
    %912 = vmatpush2.bf16.msra.mxu0 0
    %913 = vmatprep.subr.bf16.mxu0 0
    %914 = vmatpush2.bf16.msra.mxu0 0
    %915 = vmatprep.mubr.bf16.mxu0 0
    %916 = vmatmul.mubr.bf16.gmra.mxu0 %v882
    %v917 = vpop.f32.mrf.mxu0
    %v918 = vadd.f32 0.0, %v917
    %v919 = vpop.f32.mrf.mxu0
    %v920 = vadd.f32 0.0, %v919
    %v921 = vpop.f32.mrf.mxu0
    %v922 = vpop.f32.mrf.mxu0
    %923 = vdwg.mxu0
    %924 = vmatprep.subr.bf16.mxu0 0
    %925 = vmatpush1.bf16.msra.mxu0 %v528
    %926 = vmatprep.subr.bf16.mxu0 0
    %927 = vmatpush1.bf16.msra.mxu0 %v525
    %928 = vmatprep.subr.bf16.mxu0 0
    %929 = vmatpush1.bf16.msra.mxu0 %v522
    %930 = vmatprep.subr.bf16.mxu0 0
    %931 = vmatpush1.bf16.msra.mxu0 %v519
    %932 = vmatprep.subr.bf16.mxu0 0
    %933 = vmatpush1.bf16.msra.mxu0 %v516
    %934 = vmatprep.subr.bf16.mxu0 0
    %935 = vmatpush1.bf16.msra.mxu0 %v513
    %936 = vmatprep.subr.bf16.mxu0 0
    %937 = vmatpush1.bf16.msra.mxu0 %v510
    %938 = vmatprep.subr.bf16.mxu0 0
    %939 = vmatpush1.bf16.msra.mxu0 %v507
    %940 = vmatprep.subr.bf16.mxu0 0
    %941 = vmatpush2.bf16.msra.mxu0 0
    %942 = vmatprep.subr.bf16.mxu0 0
    %943 = vmatpush2.bf16.msra.mxu0 0
    %944 = vmatprep.subr.bf16.mxu0 0
    %945 = vmatpush2.bf16.msra.mxu0 0
    %946 = vmatprep.subr.bf16.mxu0 0
    %947 = vmatpush2.bf16.msra.mxu0 0
    %948 = vmatprep.subr.bf16.mxu0 0
    %949 = vmatpush2.bf16.msra.mxu0 0
    %950 = vmatprep.subr.bf16.mxu0 0
    %951 = vmatpush2.bf16.msra.mxu0 0
    %952 = vmatprep.subr.bf16.mxu0 0
    %953 = vmatpush2.bf16.msra.mxu0 0
    %954 = vmatprep.subr.bf16.mxu0 0
    %955 = vmatpush2.bf16.msra.mxu0 0
    %956 = vmatprep.mubr.bf16.mxu0 0
    %957 = vmatmul.mubr.bf16.gmra.mxu0 %v882
    %v958 = vpop.f32.mrf.mxu0
    %v959 = vadd.f32 0.0, %v958
    %v960 = vpop.f32.mrf.mxu0
    %v961 = vpop.f32.mrf.mxu0
    %v962 = vpop.f32.mrf.mxu0
    %963 = vdwg.mxu0
    %v964 = vadd.f32 %v879, %v918
    %v965 = vxor.u32 %v964, 2147483648
    %v966 = vmul.f32 %v965, 1.442695
    %v967 = vpow.pop %v966
    %v968 = vadd.f32 %v967, 1.0
    %v969 = vrcp.pop %v968
    %v970 = vmul.f32 1.0, %v969
    %v971 = vadd.f32 %v880, %v920
    %v972 = vxor.u32 %v971, 2147483648
    %v973 = vmul.f32 %v972, 1.442695
    %v974 = vpow.pop %v973
    %v975 = vadd.f32 %v974, 1.0
    %v976 = vrcp.pop %v975
    %v977 = vmul.f32 1.0, %v976
    %v978 = vadd.f32 %v959, %v160
    %v979 = vmul.f32 %v970, %v978
    %v980 = vadd.f32 %v881, %v979
    %v981 = vtanh.pop %v980
    %v982 = vsub.f32 1.0, %v977
    %v983 = vmul.f32 %v982, %v981
    %v984 = vmul.f32 %v977, %v875
    %v985 = vadd.f32 %v983, %v984
    %s986 = smul.u32 4, 3
    %s987 = smul.addr %s986, 8
    %s988 = scalar_lea.vmem [#allocation2], %s987
    %v989 = vld [vmem:[%s988] sm:$0xff]
    %v990 = vld [vmem:[%s988 + $0x8] sm:$0xff]
    %v991 = vld [vmem:[%s988 + $0x10] sm:$0xff]
    %v992 = vpack.c.bf16 %v985, %v985
    %993 = vmatprep.subr.bf16.mxu0 %v527
    %994 = vmatpush1.bf16.msra.mxu0 %v526
    %995 = vmatprep.subr.bf16.mxu0 %v524
    %996 = vmatpush1.bf16.msra.mxu0 %v523
    %997 = vmatprep.subr.bf16.mxu0 %v521
    %998 = vmatpush1.bf16.msra.mxu0 %v520
    %999 = vmatprep.subr.bf16.mxu0 %v518
    %1000 = vmatpush1.bf16.msra.mxu0 %v517
    %1001 = vmatprep.subr.bf16.mxu0 %v515
    %1002 = vmatpush1.bf16.msra.mxu0 %v514
    %1003 = vmatprep.subr.bf16.mxu0 %v512
    %1004 = vmatpush1.bf16.msra.mxu0 %v511
    %1005 = vmatprep.subr.bf16.mxu0 %v509
    %1006 = vmatpush1.bf16.msra.mxu0 %v508
    %1007 = vmatprep.subr.bf16.mxu0 %v506
    %1008 = vmatpush1.bf16.msra.mxu0 %v505
    %1009 = vmatprep.subr.bf16.mxu0 0
    %1010 = vmatpush2.bf16.msra.mxu0 0
    %1011 = vmatprep.subr.bf16.mxu0 0
    %1012 = vmatpush2.bf16.msra.mxu0 0
    %1013 = vmatprep.subr.bf16.mxu0 0
    %1014 = vmatpush2.bf16.msra.mxu0 0
    %1015 = vmatprep.subr.bf16.mxu0 0
    %1016 = vmatpush2.bf16.msra.mxu0 0
    %1017 = vmatprep.subr.bf16.mxu0 0
    %1018 = vmatpush2.bf16.msra.mxu0 0
    %1019 = vmatprep.subr.bf16.mxu0 0
    %1020 = vmatpush2.bf16.msra.mxu0 0
    %1021 = vmatprep.subr.bf16.mxu0 0
    %1022 = vmatpush2.bf16.msra.mxu0 0
    %1023 = vmatprep.subr.bf16.mxu0 0
    %1024 = vmatpush2.bf16.msra.mxu0 0
    %1025 = vmatprep.mubr.bf16.mxu0 0
    %1026 = vmatmul.mubr.bf16.gmra.mxu0 %v992
    %v1027 = vpop.f32.mrf.mxu0
    %v1028 = vadd.f32 0.0, %v1027
    %v1029 = vpop.f32.mrf.mxu0
    %v1030 = vadd.f32 0.0, %v1029
    %v1031 = vpop.f32.mrf.mxu0
    %v1032 = vpop.f32.mrf.mxu0
    %1033 = vdwg.mxu0
    %1034 = vmatprep.subr.bf16.mxu0 0
    %1035 = vmatpush1.bf16.msra.mxu0 %v528
    %1036 = vmatprep.subr.bf16.mxu0 0
    %1037 = vmatpush1.bf16.msra.mxu0 %v525
    %1038 = vmatprep.subr.bf16.mxu0 0
    %1039 = vmatpush1.bf16.msra.mxu0 %v522
    %1040 = vmatprep.subr.bf16.mxu0 0
    %1041 = vmatpush1.bf16.msra.mxu0 %v519
    %1042 = vmatprep.subr.bf16.mxu0 0
    %1043 = vmatpush1.bf16.msra.mxu0 %v516
    %1044 = vmatprep.subr.bf16.mxu0 0
    %1045 = vmatpush1.bf16.msra.mxu0 %v513
    %1046 = vmatprep.subr.bf16.mxu0 0
    %1047 = vmatpush1.bf16.msra.mxu0 %v510
    %1048 = vmatprep.subr.bf16.mxu0 0
    %1049 = vmatpush1.bf16.msra.mxu0 %v507
    %1050 = vmatprep.subr.bf16.mxu0 0
    %1051 = vmatpush2.bf16.msra.mxu0 0
    %1052 = vmatprep.subr.bf16.mxu0 0
    %1053 = vmatpush2.bf16.msra.mxu0 0
    %1054 = vmatprep.subr.bf16.mxu0 0
    %1055 = vmatpush2.bf16.msra.mxu0 0
    %1056 = vmatprep.subr.bf16.mxu0 0
    %1057 = vmatpush2.bf16.msra.mxu0 0
    %1058 = vmatprep.subr.bf16.mxu0 0
    %1059 = vmatpush2.bf16.msra.mxu0 0
    %1060 = vmatprep.subr.bf16.mxu0 0
    %1061 = vmatpush2.bf16.msra.mxu0 0
    %1062 = vmatprep.subr.bf16.mxu0 0
    %1063 = vmatpush2.bf16.msra.mxu0 0
    %1064 = vmatprep.subr.bf16.mxu0 0
    %1065 = vmatpush2.bf16.msra.mxu0 0
    %1066 = vmatprep.mubr.bf16.mxu0 0
    %1067 = vmatmul.mubr.bf16.gmra.mxu0 %v992
    %v1068 = vpop.f32.mrf.mxu0
    %v1069 = vadd.f32 0.0, %v1068
    %v1070 = vpop.f32.mrf.mxu0
    %v1071 = vpop.f32.mrf.mxu0
    %v1072 = vpop.f32.mrf.mxu0
    %1073 = vdwg.mxu0
    %v1074 = vadd.f32 %v989, %v1028
    %v1075 = vxor.u32 %v1074, 2147483648
    %v1076 = vmul.f32 %v1075, 1.442695
    %v1077 = vpow.pop %v1076
    %v1078 = vadd.f32 %v1077, 1.0
    %v1079 = vrcp.pop %v1078
    %v1080 = vmul.f32 1.0, %v1079
    %v1081 = vadd.f32 %v990, %v1030
    %v1082 = vxor.u32 %v1081, 2147483648
    %v1083 = vmul.f32 %v1082, 1.442695
    %v1084 = vpow.pop %v1083
    %v1085 = vadd.f32 %v1084, 1.0
    %v1086 = vrcp.pop %v1085
    %v1087 = vmul.f32 1.0, %v1086
    %v1088 = vadd.f32 %v1069, %v160
    %v1089 = vmul.f32 %v1080, %v1088
    %v1090 = vadd.f32 %v991, %v1089
    %v1091 = vtanh.pop %v1090
    %v1092 = vsub.f32 1.0, %v1087
    %v1093 = vmul.f32 %v1092, %v1091
    %v1094 = vmul.f32 %v1087, %v985
    %v1095 = vadd.f32 %v1093, %v1094
    %s1096 = smul.u32 5, 3
    %s1097 = smul.addr %s1096, 8
    %s1098 = scalar_lea.vmem [#allocation2], %s1097
    %v1099 = vld [vmem:[%s1098] sm:$0xff]
    %v1100 = vld [vmem:[%s1098 + $0x8] sm:$0xff]
    %v1101 = vld [vmem:[%s1098 + $0x10] sm:$0xff]
    %v1102 = vpack.c.bf16 %v1095, %v1095
    %1103 = vmatprep.subr.bf16.mxu0 %v527
    %1104 = vmatpush1.bf16.msra.mxu0 %v526
    %1105 = vmatprep.subr.bf16.mxu0 %v524
    %1106 = vmatpush1.bf16.msra.mxu0 %v523
    %1107 = vmatprep.subr.bf16.mxu0 %v521
    %1108 = vmatpush1.bf16.msra.mxu0 %v520
    %1109 = vmatprep.subr.bf16.mxu0 %v518
    %1110 = vmatpush1.bf16.msra.mxu0 %v517
    %1111 = vmatprep.subr.bf16.mxu0 %v515
    %1112 = vmatpush1.bf16.msra.mxu0 %v514
    %1113 = vmatprep.subr.bf16.mxu0 %v512
    %1114 = vmatpush1.bf16.msra.mxu0 %v511
    %1115 = vmatprep.subr.bf16.mxu0 %v509
    %1116 = vmatpush1.bf16.msra.mxu0 %v508
    %1117 = vmatprep.subr.bf16.mxu0 %v506
    %1118 = vmatpush1.bf16.msra.mxu0 %v505
    %1119 = vmatprep.subr.bf16.mxu0 0
    %1120 = vmatpush2.bf16.msra.mxu0 0
    %1121 = vmatprep.subr.bf16.mxu0 0
    %1122 = vmatpush2.bf16.msra.mxu0 0
    %1123 = vmatprep.subr.bf16.mxu0 0
    %1124 = vmatpush2.bf16.msra.mxu0 0
    %1125 = vmatprep.subr.bf16.mxu0 0
    %1126 = vmatpush2.bf16.msra.mxu0 0
    %1127 = vmatprep.subr.bf16.mxu0 0
    %1128 = vmatpush2.bf16.msra.mxu0 0
    %1129 = vmatprep.subr.bf16.mxu0 0
    %1130 = vmatpush2.bf16.msra.mxu0 0
    %1131 = vmatprep.subr.bf16.mxu0 0
    %1132 = vmatpush2.bf16.msra.mxu0 0
    %1133 = vmatprep.subr.bf16.mxu0 0
    %1134 = vmatpush2.bf16.msra.mxu0 0
    %1135 = vmatprep.mubr.bf16.mxu0 0
    %1136 = vmatmul.mubr.bf16.gmra.mxu0 %v1102
    %v1137 = vpop.f32.mrf.mxu0
    %v1138 = vadd.f32 0.0, %v1137
    %v1139 = vpop.f32.mrf.mxu0
    %v1140 = vadd.f32 0.0, %v1139
    %v1141 = vpop.f32.mrf.mxu0
    %v1142 = vpop.f32.mrf.mxu0
    %1143 = vdwg.mxu0
    %1144 = vmatprep.subr.bf16.mxu0 0
    %1145 = vmatpush1.bf16.msra.mxu0 %v528
    %1146 = vmatprep.subr.bf16.mxu0 0
    %1147 = vmatpush1.bf16.msra.mxu0 %v525
    %1148 = vmatprep.subr.bf16.mxu0 0
    %1149 = vmatpush1.bf16.msra.mxu0 %v522
    %1150 = vmatprep.subr.bf16.mxu0 0
    %1151 = vmatpush1.bf16.msra.mxu0 %v519
    %1152 = vmatprep.subr.bf16.mxu0 0
    %1153 = vmatpush1.bf16.msra.mxu0 %v516
    %1154 = vmatprep.subr.bf16.mxu0 0
    %1155 = vmatpush1.bf16.msra.mxu0 %v513
    %1156 = vmatprep.subr.bf16.mxu0 0
    %1157 = vmatpush1.bf16.msra.mxu0 %v510
    %1158 = vmatprep.subr.bf16.mxu0 0
    %1159 = vmatpush1.bf16.msra.mxu0 %v507
    %1160 = vmatprep.subr.bf16.mxu0 0
    %1161 = vmatpush2.bf16.msra.mxu0 0
    %1162 = vmatprep.subr.bf16.mxu0 0
    %1163 = vmatpush2.bf16.msra.mxu0 0
    %1164 = vmatprep.subr.bf16.mxu0 0
    %1165 = vmatpush2.bf16.msra.mxu0 0
    %1166 = vmatprep.subr.bf16.mxu0 0
    %1167 = vmatpush2.bf16.msra.mxu0 0
    %1168 = vmatprep.subr.bf16.mxu0 0
    %1169 = vmatpush2.bf16.msra.mxu0 0
    %1170 = vmatprep.subr.bf16.mxu0 0
    %1171 = vmatpush2.bf16.msra.mxu0 0
    %1172 = vmatprep.subr.bf16.mxu0 0
    %1173 = vmatpush2.bf16.msra.mxu0 0
    %1174 = vmatprep.subr.bf16.mxu0 0
    %1175 = vmatpush2.bf16.msra.mxu0 0
    %1176 = vmatprep.mubr.bf16.mxu0 0
    %1177 = vmatmul.mubr.bf16.gmra.mxu0 %v1102
    %v1178 = vpop.f32.mrf.mxu0
    %v1179 = vadd.f32 0.0, %v1178
    %v1180 = vpop.f32.mrf.mxu0
    %v1181 = vpop.f32.mrf.mxu0
    %v1182 = vpop.f32.mrf.mxu0
    %1183 = vdwg.mxu0
    %v1184 = vadd.f32 %v1099, %v1138
    %v1185 = vxor.u32 %v1184, 2147483648
    %v1186 = vmul.f32 %v1185, 1.442695
    %v1187 = vpow.pop %v1186
    %v1188 = vadd.f32 %v1187, 1.0
    %v1189 = vrcp.pop %v1188
    %v1190 = vmul.f32 1.0, %v1189
    %v1191 = vadd.f32 %v1100, %v1140
    %v1192 = vxor.u32 %v1191, 2147483648
    %v1193 = vmul.f32 %v1192, 1.442695
    %v1194 = vpow.pop %v1193
    %v1195 = vadd.f32 %v1194, 1.0
    %v1196 = vrcp.pop %v1195
    %v1197 = vmul.f32 1.0, %v1196
    %v1198 = vadd.f32 %v1179, %v160
    %v1199 = vmul.f32 %v1190, %v1198
    %v1200 = vadd.f32 %v1101, %v1199
    %v1201 = vtanh.pop %v1200
    %v1202 = vsub.f32 1.0, %v1197
    %v1203 = vmul.f32 %v1202, %v1201
    %v1204 = vmul.f32 %v1197, %v1095
    %v1205 = vadd.f32 %v1203, %v1204
    %s1206 = smul.u32 6, 3
    %s1207 = smul.addr %s1206, 8
    %s1208 = scalar_lea.vmem [#allocation2], %s1207
    %v1209 = vld [vmem:[%s1208] sm:$0xff]
    %v1210 = vld [vmem:[%s1208 + $0x8] sm:$0xff]
    %v1211 = vld [vmem:[%s1208 + $0x10] sm:$0xff]
    %v1212 = vpack.c.bf16 %v1205, %v1205
    %1213 = vmatprep.subr.bf16.mxu0 %v527
    %1214 = vmatpush1.bf16.msra.mxu0 %v526
    %1215 = vmatprep.subr.bf16.mxu0 %v524
    %1216 = vmatpush1.bf16.msra.mxu0 %v523
    %1217 = vmatprep.subr.bf16.mxu0 %v521
    %1218 = vmatpush1.bf16.msra.mxu0 %v520
    %1219 = vmatprep.subr.bf16.mxu0 %v518
    %1220 = vmatpush1.bf16.msra.mxu0 %v517
    %1221 = vmatprep.subr.bf16.mxu0 %v515
    %1222 = vmatpush1.bf16.msra.mxu0 %v514
    %1223 = vmatprep.subr.bf16.mxu0 %v512
    %1224 = vmatpush1.bf16.msra.mxu0 %v511
    %1225 = vmatprep.subr.bf16.mxu0 %v509
    %1226 = vmatpush1.bf16.msra.mxu0 %v508
    %1227 = vmatprep.subr.bf16.mxu0 %v506
    %1228 = vmatpush1.bf16.msra.mxu0 %v505
    %1229 = vmatprep.subr.bf16.mxu0 0
    %1230 = vmatpush2.bf16.msra.mxu0 0
    %1231 = vmatprep.subr.bf16.mxu0 0
    %1232 = vmatpush2.bf16.msra.mxu0 0
    %1233 = vmatprep.subr.bf16.mxu0 0
    %1234 = vmatpush2.bf16.msra.mxu0 0
    %1235 = vmatprep.subr.bf16.mxu0 0
    %1236 = vmatpush2.bf16.msra.mxu0 0
    %1237 = vmatprep.subr.bf16.mxu0 0
    %1238 = vmatpush2.bf16.msra.mxu0 0
    %1239 = vmatprep.subr.bf16.mxu0 0
    %1240 = vmatpush2.bf16.msra.mxu0 0
    %1241 = vmatprep.subr.bf16.mxu0 0
    %1242 = vmatpush2.bf16.msra.mxu0 0
    %1243 = vmatprep.subr.bf16.mxu0 0
    %1244 = vmatpush2.bf16.msra.mxu0 0
    %1245 = vmatprep.mubr.bf16.mxu0 0
    %1246 = vmatmul.mubr.bf16.gmra.mxu0 %v1212
    %v1247 = vpop.f32.mrf.mxu0
    %v1248 = vadd.f32 0.0, %v1247
    %v1249 = vpop.f32.mrf.mxu0
    %v1250 = vadd.f32 0.0, %v1249
    %v1251 = vpop.f32.mrf.mxu0
    %v1252 = vpop.f32.mrf.mxu0
    %1253 = vdwg.mxu0
    %1254 = vmatprep.subr.bf16.mxu0 0
    %1255 = vmatpush1.bf16.msra.mxu0 %v528
    %1256 = vmatprep.subr.bf16.mxu0 0
    %1257 = vmatpush1.bf16.msra.mxu0 %v525
    %1258 = vmatprep.subr.bf16.mxu0 0
    %1259 = vmatpush1.bf16.msra.mxu0 %v522
    %1260 = vmatprep.subr.bf16.mxu0 0
    %1261 = vmatpush1.bf16.msra.mxu0 %v519
    %1262 = vmatprep.subr.bf16.mxu0 0
    %1263 = vmatpush1.bf16.msra.mxu0 %v516
    %1264 = vmatprep.subr.bf16.mxu0 0
    %1265 = vmatpush1.bf16.msra.mxu0 %v513
    %1266 = vmatprep.subr.bf16.mxu0 0
    %1267 = vmatpush1.bf16.msra.mxu0 %v510
    %1268 = vmatprep.subr.bf16.mxu0 0
    %1269 = vmatpush1.bf16.msra.mxu0 %v507
    %1270 = vmatprep.subr.bf16.mxu0 0
    %1271 = vmatpush2.bf16.msra.mxu0 0
    %1272 = vmatprep.subr.bf16.mxu0 0
    %1273 = vmatpush2.bf16.msra.mxu0 0
    %1274 = vmatprep.subr.bf16.mxu0 0
    %1275 = vmatpush2.bf16.msra.mxu0 0
    %1276 = vmatprep.subr.bf16.mxu0 0
    %1277 = vmatpush2.bf16.msra.mxu0 0
    %1278 = vmatprep.subr.bf16.mxu0 0
    %1279 = vmatpush2.bf16.msra.mxu0 0
    %1280 = vmatprep.subr.bf16.mxu0 0
    %1281 = vmatpush2.bf16.msra.mxu0 0
    %1282 = vmatprep.subr.bf16.mxu0 0
    %1283 = vmatpush2.bf16.msra.mxu0 0
    %1284 = vmatprep.subr.bf16.mxu0 0
    %1285 = vmatpush2.bf16.msra.mxu0 0
    %1286 = vmatprep.mubr.bf16.mxu0 0
    %1287 = vmatmul.mubr.bf16.gmra.mxu0 %v1212
    %v1288 = vpop.f32.mrf.mxu0
    %v1289 = vadd.f32 0.0, %v1288
    %v1290 = vpop.f32.mrf.mxu0
    %v1291 = vpop.f32.mrf.mxu0
    %v1292 = vpop.f32.mrf.mxu0
    %1293 = vdwg.mxu0
    %v1294 = vadd.f32 %v1209, %v1248
    %v1295 = vxor.u32 %v1294, 2147483648
    %v1296 = vmul.f32 %v1295, 1.442695
    %v1297 = vpow.pop %v1296
    %v1298 = vadd.f32 %v1297, 1.0
    %v1299 = vrcp.pop %v1298
    %v1300 = vmul.f32 1.0, %v1299
    %v1301 = vadd.f32 %v1210, %v1250
    %v1302 = vxor.u32 %v1301, 2147483648
    %v1303 = vmul.f32 %v1302, 1.442695
    %v1304 = vpow.pop %v1303
    %v1305 = vadd.f32 %v1304, 1.0
    %v1306 = vrcp.pop %v1305
    %v1307 = vmul.f32 1.0, %v1306
    %v1308 = vadd.f32 %v1289, %v160
    %v1309 = vmul.f32 %v1300, %v1308
    %v1310 = vadd.f32 %v1211, %v1309
    %v1311 = vtanh.pop %v1310
    %v1312 = vsub.f32 1.0, %v1307
    %v1313 = vmul.f32 %v1312, %v1311
    %v1314 = vmul.f32 %v1307, %v1205
    %v1315 = vadd.f32 %v1313, %v1314
    %s1316 = smul.u32 7, 3
    %s1317 = smul.addr %s1316, 8
    %s1318 = scalar_lea.vmem [#allocation2], %s1317
    %v1319 = vld [vmem:[%s1318] sm:$0xff]
    %v1320 = vld [vmem:[%s1318 + $0x8] sm:$0xff]
    %v1321 = vld [vmem:[%s1318 + $0x10] sm:$0xff]
    %v1322 = vpack.c.bf16 %v1315, %v1315
    %1323 = vmatprep.subr.bf16.mxu0 %v527
    %1324 = vmatpush1.bf16.msra.mxu0 %v526
    %1325 = vmatprep.subr.bf16.mxu0 %v524
    %1326 = vmatpush1.bf16.msra.mxu0 %v523
    %1327 = vmatprep.subr.bf16.mxu0 %v521
    %1328 = vmatpush1.bf16.msra.mxu0 %v520
    %1329 = vmatprep.subr.bf16.mxu0 %v518
    %1330 = vmatpush1.bf16.msra.mxu0 %v517
    %1331 = vmatprep.subr.bf16.mxu0 %v515
    %1332 = vmatpush1.bf16.msra.mxu0 %v514
    %1333 = vmatprep.subr.bf16.mxu0 %v512
    %1334 = vmatpush1.bf16.msra.mxu0 %v511
    %1335 = vmatprep.subr.bf16.mxu0 %v509
    %1336 = vmatpush1.bf16.msra.mxu0 %v508
    %1337 = vmatprep.subr.bf16.mxu0 %v506
    %1338 = vmatpush1.bf16.msra.mxu0 %v505
    %1339 = vmatprep.subr.bf16.mxu0 0
    %1340 = vmatpush2.bf16.msra.mxu0 0
    %1341 = vmatprep.subr.bf16.mxu0 0
    %1342 = vmatpush2.bf16.msra.mxu0 0
    %1343 = vmatprep.subr.bf16.mxu0 0
    %1344 = vmatpush2.bf16.msra.mxu0 0
    %1345 = vmatprep.subr.bf16.mxu0 0
    %1346 = vmatpush2.bf16.msra.mxu0 0
    %1347 = vmatprep.subr.bf16.mxu0 0
    %1348 = vmatpush2.bf16.msra.mxu0 0
    %1349 = vmatprep.subr.bf16.mxu0 0
    %1350 = vmatpush2.bf16.msra.mxu0 0
    %1351 = vmatprep.subr.bf16.mxu0 0
    %1352 = vmatpush2.bf16.msra.mxu0 0
    %1353 = vmatprep.subr.bf16.mxu0 0
    %1354 = vmatpush2.bf16.msra.mxu0 0
    %1355 = vmatprep.mubr.bf16.mxu0 0
    %1356 = vmatmul.mubr.bf16.gmra.mxu0 %v1322
    %v1357 = vpop.f32.mrf.mxu0
    %v1358 = vadd.f32 0.0, %v1357
    %v1359 = vpop.f32.mrf.mxu0
    %v1360 = vadd.f32 0.0, %v1359
    %v1361 = vpop.f32.mrf.mxu0
    %v1362 = vpop.f32.mrf.mxu0
    %1363 = vdwg.mxu0
    %1364 = vmatprep.subr.bf16.mxu0 0
    %1365 = vmatpush1.bf16.msra.mxu0 %v528
    %1366 = vmatprep.subr.bf16.mxu0 0
    %1367 = vmatpush1.bf16.msra.mxu0 %v525
    %1368 = vmatprep.subr.bf16.mxu0 0
    %1369 = vmatpush1.bf16.msra.mxu0 %v522
    %1370 = vmatprep.subr.bf16.mxu0 0
    %1371 = vmatpush1.bf16.msra.mxu0 %v519
    %1372 = vmatprep.subr.bf16.mxu0 0
    %1373 = vmatpush1.bf16.msra.mxu0 %v516
    %1374 = vmatprep.subr.bf16.mxu0 0
    %1375 = vmatpush1.bf16.msra.mxu0 %v513
    %1376 = vmatprep.subr.bf16.mxu0 0
    %1377 = vmatpush1.bf16.msra.mxu0 %v510
    %1378 = vmatprep.subr.bf16.mxu0 0
    %1379 = vmatpush1.bf16.msra.mxu0 %v507
    %1380 = vmatprep.subr.bf16.mxu0 0
    %1381 = vmatpush2.bf16.msra.mxu0 0
    %1382 = vmatprep.subr.bf16.mxu0 0
    %1383 = vmatpush2.bf16.msra.mxu0 0
    %1384 = vmatprep.subr.bf16.mxu0 0
    %1385 = vmatpush2.bf16.msra.mxu0 0
    %1386 = vmatprep.subr.bf16.mxu0 0
    %1387 = vmatpush2.bf16.msra.mxu0 0
    %1388 = vmatprep.subr.bf16.mxu0 0
    %1389 = vmatpush2.bf16.msra.mxu0 0
    %1390 = vmatprep.subr.bf16.mxu0 0
    %1391 = vmatpush2.bf16.msra.mxu0 0
    %1392 = vmatprep.subr.bf16.mxu0 0
    %1393 = vmatpush2.bf16.msra.mxu0 0
    %1394 = vmatprep.subr.bf16.mxu0 0
    %1395 = vmatpush2.bf16.msra.mxu0 0
    %1396 = vmatprep.mubr.bf16.mxu0 0
    %1397 = vmatmul.mubr.bf16.gmra.mxu0 %v1322
    %v1398 = vpop.f32.mrf.mxu0
    %v1399 = vadd.f32 0.0, %v1398
    %v1400 = vpop.f32.mrf.mxu0
    %v1401 = vpop.f32.mrf.mxu0
    %v1402 = vpop.f32.mrf.mxu0
    %1403 = vdwg.mxu0
    %v1404 = vadd.f32 %v1319, %v1358
    %v1405 = vxor.u32 %v1404, 2147483648
    %v1406 = vmul.f32 %v1405, 1.442695
    %v1407 = vpow.pop %v1406
    %v1408 = vadd.f32 %v1407, 1.0
    %v1409 = vrcp.pop %v1408
    %v1410 = vmul.f32 1.0, %v1409
    %v1411 = vadd.f32 %v1320, %v1360
    %v1412 = vxor.u32 %v1411, 2147483648
    %v1413 = vmul.f32 %v1412, 1.442695
    %v1414 = vpow.pop %v1413
    %v1415 = vadd.f32 %v1414, 1.0
    %v1416 = vrcp.pop %v1415
    %v1417 = vmul.f32 1.0, %v1416
    %v1418 = vadd.f32 %v1399, %v160
    %v1419 = vmul.f32 %v1410, %v1418
    %v1420 = vadd.f32 %v1321, %v1419
    %v1421 = vtanh.pop %v1420
    %v1422 = vsub.f32 1.0, %v1417
    %v1423 = vmul.f32 %v1422, %v1421
    %v1424 = vmul.f32 %v1417, %v1315
    %v1425 = vadd.f32 %v1423, %v1424
    %1426 = vst [vmem:[#allocation3] sm:$0xff] %v1425
    %v1427 = vpack.c.bf16 %v1425, %v1425
    %v1476 = vunpack.c.l.b16 %v107
    %v1477 = vunpack.c.h.b16 %v107
    %v1478 = vunpack.c.l.b16 %v108
    %v1479 = vunpack.c.h.b16 %v108
    %v1480 = vunpack.c.l.b16 %v109
    %v1481 = vunpack.c.h.b16 %v109
    %v1482 = vunpack.c.l.b16 %v110
    %v1483 = vunpack.c.h.b16 %v110
    %v1484 = vunpack.c.l.b16 %v111
    %v1485 = vunpack.c.h.b16 %v111
    %v1486 = vunpack.c.l.b16 %v112
    %v1487 = vunpack.c.h.b16 %v112
    %v1488 = vunpack.c.l.b16 %v113
    %v1489 = vunpack.c.h.b16 %v113
    %v1490 = vunpack.c.l.b16 %v114
    %v1491 = vunpack.c.h.b16 %v114
    %v1492 = vunpack.c.l.b16 %v115
    %v1493 = vunpack.c.h.b16 %v115
    %v1494 = vunpack.c.l.b16 %v116
    %v1495 = vunpack.c.h.b16 %v116
    %v1496 = vunpack.c.l.b16 %v117
    %v1497 = vunpack.c.h.b16 %v117
    %v1498 = vunpack.c.l.b16 %v118
    %v1499 = vunpack.c.h.b16 %v118
    %v1500 = vunpack.c.l.b16 %v119
    %v1501 = vunpack.c.h.b16 %v119
    %v1502 = vunpack.c.l.b16 %v120
    %v1503 = vunpack.c.h.b16 %v120
    %v1504 = vunpack.c.l.b16 %v121
    %v1505 = vunpack.c.h.b16 %v121
    %v1506 = vunpack.c.l.b16 %v122
    %v1507 = vunpack.c.h.b16 %v122
    %v1508 = vunpack.c.l.b16 %v123
    %v1509 = vunpack.c.h.b16 %v123
    %v1510 = vunpack.c.l.b16 %v124
    %v1511 = vunpack.c.h.b16 %v124
    %v1512 = vunpack.c.l.b16 %v125
    %v1513 = vunpack.c.h.b16 %v125
    %v1514 = vunpack.c.l.b16 %v126
    %v1515 = vunpack.c.h.b16 %v126
    %v1516 = vunpack.c.l.b16 %v127
    %v1517 = vunpack.c.h.b16 %v127
    %v1518 = vunpack.c.l.b16 %v128
    %v1519 = vunpack.c.h.b16 %v128
    %v1520 = vunpack.c.l.b16 %v129
    %v1521 = vunpack.c.h.b16 %v129
    %v1522 = vunpack.c.l.b16 %v130
    %v1523 = vunpack.c.h.b16 %v130
    %v1524 = vunpack.c.l.b16 %v131
    %v1525 = vunpack.c.h.b16 %v131
    %v1526 = vunpack.c.l.b16 %v132
    %v1527 = vunpack.c.h.b16 %v132
    %v1528 = vunpack.c.l.b16 %v133
    %v1529 = vunpack.c.h.b16 %v133
    %v1530 = vunpack.c.l.b16 %v134
    %v1531 = vunpack.c.h.b16 %v134
    %v1532 = vunpack.c.l.b16 %v135
    %v1533 = vunpack.c.h.b16 %v135
    %v1534 = vunpack.c.l.b16 %v136
    %v1535 = vunpack.c.h.b16 %v136
    %v1536 = vunpack.c.l.b16 %v137
    %v1537 = vunpack.c.h.b16 %v137
    %v1538 = vunpack.c.l.b16 %v138
    %v1539 = vunpack.c.h.b16 %v138
    %v1540 = vunpack.c.l.b16 %v139
    %v1541 = vunpack.c.h.b16 %v139
    %v1542 = vunpack.c.l.b16 %v140
    %v1543 = vunpack.c.h.b16 %v140
    %v1544 = vunpack.c.l.b16 %v141
    %v1545 = vunpack.c.h.b16 %v141
    %v1546 = vunpack.c.l.b16 %v142
    %v1547 = vunpack.c.h.b16 %v142
    %v1548 = vunpack.c.l.b16 %v143
    %v1549 = vunpack.c.h.b16 %v143
    %v1550 = vunpack.c.l.b16 %v144
    %v1551 = vunpack.c.h.b16 %v144
    %v1552 = vunpack.c.l.b16 %v145
    %v1553 = vunpack.c.h.b16 %v145
    %v1554 = vunpack.c.l.b16 %v146
    %v1555 = vunpack.c.h.b16 %v146
    %v1556 = vunpack.c.l.b16 %v147
    %v1557 = vunpack.c.h.b16 %v147
    %v1558 = vunpack.c.l.b16 %v148
    %v1559 = vunpack.c.h.b16 %v148
    %v1560 = vunpack.c.l.b16 %v149
    %v1561 = vunpack.c.h.b16 %v149
    %v1562 = vunpack.c.l.b16 %v150
    %v1563 = vunpack.c.h.b16 %v150
    %v1564 = vunpack.c.l.b16 %v151
    %v1565 = vunpack.c.h.b16 %v151
    %v1566 = vunpack.c.l.b16 %v152
    %v1567 = vunpack.c.h.b16 %v152
    %v1568 = vunpack.c.l.b16 %v153
    %v1569 = vunpack.c.h.b16 %v153
    %v1570 = vunpack.c.l.b16 %v154
    %v1571 = vunpack.c.h.b16 %v154
    %v1572 = vpack.c.b16 %v1482, %v1476
    %v1573 = vpack.c.b16 %v1483, %v1477
    %v1574 = vpack.c.b16 %v1484, %v1478
    %v1575 = vpack.c.b16 %v1485, %v1479
    %v1576 = vpack.c.b16 %v1486, %v1480
    %v1577 = vpack.c.b16 %v1487, %v1481
    %v1578 = vpack.c.b16 %v1494, %v1488
    %v1579 = vpack.c.b16 %v1495, %v1489
    %v1580 = vpack.c.b16 %v1496, %v1490
    %v1581 = vpack.c.b16 %v1497, %v1491
    %v1582 = vpack.c.b16 %v1498, %v1492
    %v1583 = vpack.c.b16 %v1499, %v1493
    %v1584 = vpack.c.b16 %v1506, %v1500
    %v1585 = vpack.c.b16 %v1507, %v1501
    %v1586 = vpack.c.b16 %v1508, %v1502
    %v1587 = vpack.c.b16 %v1509, %v1503
    %v1588 = vpack.c.b16 %v1510, %v1504
    %v1589 = vpack.c.b16 %v1511, %v1505
    %v1590 = vpack.c.b16 %v1518, %v1512
    %v1591 = vpack.c.b16 %v1519, %v1513
    %v1592 = vpack.c.b16 %v1520, %v1514
    %v1593 = vpack.c.b16 %v1521, %v1515
    %v1594 = vpack.c.b16 %v1522, %v1516
    %v1595 = vpack.c.b16 %v1523, %v1517
    %v1596 = vpack.c.b16 %v1530, %v1524
    %v1597 = vpack.c.b16 %v1531, %v1525
    %v1598 = vpack.c.b16 %v1532, %v1526
    %v1599 = vpack.c.b16 %v1533, %v1527
    %v1600 = vpack.c.b16 %v1534, %v1528
    %v1601 = vpack.c.b16 %v1535, %v1529
    %v1602 = vpack.c.b16 %v1542, %v1536
    %v1603 = vpack.c.b16 %v1543, %v1537
    %v1604 = vpack.c.b16 %v1544, %v1538
    %v1605 = vpack.c.b16 %v1545, %v1539
    %v1606 = vpack.c.b16 %v1546, %v1540
    %v1607 = vpack.c.b16 %v1547, %v1541
    %v1608 = vpack.c.b16 %v1554, %v1548
    %v1609 = vpack.c.b16 %v1555, %v1549
    %v1610 = vpack.c.b16 %v1556, %v1550
    %v1611 = vpack.c.b16 %v1557, %v1551
    %v1612 = vpack.c.b16 %v1558, %v1552
    %v1613 = vpack.c.b16 %v1559, %v1553
    %v1614 = vpack.c.b16 %v1566, %v1560
    %v1615 = vpack.c.b16 %v1567, %v1561
    %v1616 = vpack.c.b16 %v1568, %v1562
    %v1617 = vpack.c.b16 %v1569, %v1563
    %v1618 = vpack.c.b16 %v1570, %v1564
    %v1619 = vpack.c.b16 %v1571, %v1565
    %1668 = vmatprep.subr.bf16.mxu0 %v1615
    %1669 = vmatpush1.bf16.msra.mxu0 %v1614
    %1670 = vmatprep.subr.bf16.mxu0 %v1609
    %1671 = vmatpush1.bf16.msra.mxu0 %v1608
    %1672 = vmatprep.subr.bf16.mxu0 %v1603
    %1673 = vmatpush1.bf16.msra.mxu0 %v1602
    %1674 = vmatprep.subr.bf16.mxu0 %v1597
    %1675 = vmatpush1.bf16.msra.mxu0 %v1596
    %1676 = vmatprep.subr.bf16.mxu0 %v1591
    %1677 = vmatpush1.bf16.msra.mxu0 %v1590
    %1678 = vmatprep.subr.bf16.mxu0 %v1585
    %1679 = vmatpush1.bf16.msra.mxu0 %v1584
    %1680 = vmatprep.subr.bf16.mxu0 %v1579
    %1681 = vmatpush1.bf16.msra.mxu0 %v1578
    %1682 = vmatprep.subr.bf16.mxu0 %v1573
    %1683 = vmatpush1.bf16.msra.mxu0 %v1572
    %1684 = vmatprep.subr.bf16.mxu0 0
    %1685 = vmatpush2.bf16.msra.mxu0 0
    %1686 = vmatprep.subr.bf16.mxu0 0
    %1687 = vmatpush2.bf16.msra.mxu0 0
    %1688 = vmatprep.subr.bf16.mxu0 0
    %1689 = vmatpush2.bf16.msra.mxu0 0
    %1690 = vmatprep.subr.bf16.mxu0 0
    %1691 = vmatpush2.bf16.msra.mxu0 0
    %1692 = vmatprep.subr.bf16.mxu0 0
    %1693 = vmatpush2.bf16.msra.mxu0 0
    %1694 = vmatprep.subr.bf16.mxu0 0
    %1695 = vmatpush2.bf16.msra.mxu0 0
    %1696 = vmatprep.subr.bf16.mxu0 0
    %1697 = vmatpush2.bf16.msra.mxu0 0
    %1698 = vmatprep.subr.bf16.mxu0 0
    %1699 = vmatpush2.bf16.msra.mxu0 0
    %1700 = vmatprep.mubr.bf16.mxu0 0
    %1701 = vmatmul.mubr.bf16.gmra.mxu0 %v1427
    %v1702 = vpop.f32.mrf.mxu0
    %v1703 = vadd.f32 0.0, %v1702
    %v1704 = vpop.f32.mrf.mxu0
    %v1705 = vadd.f32 0.0, %v1704
    %v1706 = vpop.f32.mrf.mxu0
    %v1707 = vpop.f32.mrf.mxu0
    %1708 = vdwg.mxu0
    %1709 = vmatprep.subr.bf16.mxu0 %v1617
    %1710 = vmatpush1.bf16.msra.mxu0 %v1616
    %1711 = vmatprep.subr.bf16.mxu0 %v1611
    %1712 = vmatpush1.bf16.msra.mxu0 %v1610
    %1713 = vmatprep.subr.bf16.mxu0 %v1605
    %1714 = vmatpush1.bf16.msra.mxu0 %v1604
    %1715 = vmatprep.subr.bf16.mxu0 %v1599
    %1716 = vmatpush1.bf16.msra.mxu0 %v1598
    %1717 = vmatprep.subr.bf16.mxu0 %v1593
    %1718 = vmatpush1.bf16.msra.mxu0 %v1592
    %1719 = vmatprep.subr.bf16.mxu0 %v1587
    %1720 = vmatpush1.bf16.msra.mxu0 %v1586
    %1721 = vmatprep.subr.bf16.mxu0 %v1581
    %1722 = vmatpush1.bf16.msra.mxu0 %v1580
    %1723 = vmatprep.subr.bf16.mxu0 %v1575
    %1724 = vmatpush1.bf16.msra.mxu0 %v1574
    %1725 = vmatprep.subr.bf16.mxu0 0
    %1726 = vmatpush2.bf16.msra.mxu0 0
    %1727 = vmatprep.subr.bf16.mxu0 0
    %1728 = vmatpush2.bf16.msra.mxu0 0
    %1729 = vmatprep.subr.bf16.mxu0 0
    %1730 = vmatpush2.bf16.msra.mxu0 0
    %1731 = vmatprep.subr.bf16.mxu0 0
    %1732 = vmatpush2.bf16.msra.mxu0 0
    %1733 = vmatprep.subr.bf16.mxu0 0
    %1734 = vmatpush2.bf16.msra.mxu0 0
    %1735 = vmatprep.subr.bf16.mxu0 0
    %1736 = vmatpush2.bf16.msra.mxu0 0
    %1737 = vmatprep.subr.bf16.mxu0 0
    %1738 = vmatpush2.bf16.msra.mxu0 0
    %1739 = vmatprep.subr.bf16.mxu0 0
    %1740 = vmatpush2.bf16.msra.mxu0 0
    %1741 = vmatprep.mubr.bf16.mxu0 0
    %1742 = vmatmul.mubr.bf16.gmra.mxu0 %v1427
    %v1743 = vpop.f32.mrf.mxu0
    %v1744 = vadd.f32 0.0, %v1743
    %v1745 = vpop.f32.mrf.mxu0
    %v1746 = vadd.f32 0.0, %v1745
    %v1747 = vpop.f32.mrf.mxu0
    %v1748 = vpop.f32.mrf.mxu0
    %1749 = vdwg.mxu0
    %1750 = vmatprep.subr.bf16.mxu0 %v1619
    %1751 = vmatpush1.bf16.msra.mxu0 %v1618
    %1752 = vmatprep.subr.bf16.mxu0 %v1613
    %1753 = vmatpush1.bf16.msra.mxu0 %v1612
    %1754 = vmatprep.subr.bf16.mxu0 %v1607
    %1755 = vmatpush1.bf16.msra.mxu0 %v1606
    %1756 = vmatprep.subr.bf16.mxu0 %v1601
    %1757 = vmatpush1.bf16.msra.mxu0 %v1600
    %1758 = vmatprep.subr.bf16.mxu0 %v1595
    %1759 = vmatpush1.bf16.msra.mxu0 %v1594
    %1760 = vmatprep.subr.bf16.mxu0 %v1589
    %1761 = vmatpush1.bf16.msra.mxu0 %v1588
    %1762 = vmatprep.subr.bf16.mxu0 %v1583
    %1763 = vmatpush1.bf16.msra.mxu0 %v1582
    %1764 = vmatprep.subr.bf16.mxu0 %v1577
    %1765 = vmatpush1.bf16.msra.mxu0 %v1576
    %1766 = vmatprep.subr.bf16.mxu0 0
    %1767 = vmatpush2.bf16.msra.mxu0 0
    %1768 = vmatprep.subr.bf16.mxu0 0
    %1769 = vmatpush2.bf16.msra.mxu0 0
    %1770 = vmatprep.subr.bf16.mxu0 0
    %1771 = vmatpush2.bf16.msra.mxu0 0
    %1772 = vmatprep.subr.bf16.mxu0 0
    %1773 = vmatpush2.bf16.msra.mxu0 0
    %1774 = vmatprep.subr.bf16.mxu0 0
    %1775 = vmatpush2.bf16.msra.mxu0 0
    %1776 = vmatprep.subr.bf16.mxu0 0
    %1777 = vmatpush2.bf16.msra.mxu0 0
    %1778 = vmatprep.subr.bf16.mxu0 0
    %1779 = vmatpush2.bf16.msra.mxu0 0
    %1780 = vmatprep.subr.bf16.mxu0 0
    %1781 = vmatpush2.bf16.msra.mxu0 0
    %1782 = vmatprep.mubr.bf16.mxu0 0
    %1783 = vmatmul.mubr.bf16.gmra.mxu0 %v1427
    %v1784 = vpop.f32.mrf.mxu0
    %v1785 = vadd.f32 0.0, %v1784
    %v1786 = vpop.f32.mrf.mxu0
    %v1787 = vadd.f32 0.0, %v1786
    %v1788 = vpop.f32.mrf.mxu0
    %v1789 = vpop.f32.mrf.mxu0
    %1790 = vdwg.mxu0
    %v1791 = vadd.f32 %v1703, %v167
    %v1792 = vadd.f32 %v1705, %v171
    %v1793 = vadd.f32 %v1744, %v175
    %v1794 = vadd.f32 %v1791, %v1746
    %v1795 = vxor.u32 %v1794, 2147483648
    %v1796 = vmul.f32 %v1795, 1.442695
    %v1797 = vpow.pop %v1796
    %v1798 = vadd.f32 %v1797, 1.0
    %v1799 = vrcp.pop %v1798
    %v1800 = vmul.f32 1.0, %v1799
    %v1801 = vadd.f32 %v1792, %v1785
    %v1802 = vxor.u32 %v1801, 2147483648
    %v1803 = vmul.f32 %v1802, 1.442695
    %v1804 = vpow.pop %v1803
    %v1805 = vadd.f32 %v1804, 1.0
    %v1806 = vrcp.pop %v1805
    %v1807 = vmul.f32 1.0, %v1806
    %v1808 = vadd.f32 %v1787, %v160
    %v1809 = vmul.f32 %v1800, %v1808
    %v1810 = vadd.f32 %v1793, %v1809
    %v1811 = vtanh.pop %v1810
    %v1812 = vsub.f32 1.0, %v1807
    %v1813 = vmul.f32 %v1812, %v1811
    %v1814 = vmul.f32 %v1807, %v1425
    %v1815 = vadd.f32 %v1813, %v1814
    %s1816 = scalar_lea.vmem [#allocation3], 8
    %1817 = vst [vmem:[%s1816] sm:$0xff] %v1815
    %v1818 = vpack.c.bf16 %v1815, %v1815
    %1819 = vmatprep.subr.bf16.mxu0 %v1615
    %1820 = vmatpush1.bf16.msra.mxu0 %v1614
    %1821 = vmatprep.subr.bf16.mxu0 %v1609
    %1822 = vmatpush1.bf16.msra.mxu0 %v1608
    %1823 = vmatprep.subr.bf16.mxu0 %v1603
    %1824 = vmatpush1.bf16.msra.mxu0 %v1602
    %1825 = vmatprep.subr.bf16.mxu0 %v1597
    %1826 = vmatpush1.bf16.msra.mxu0 %v1596
    %1827 = vmatprep.subr.bf16.mxu0 %v1591
    %1828 = vmatpush1.bf16.msra.mxu0 %v1590
    %1829 = vmatprep.subr.bf16.mxu0 %v1585
    %1830 = vmatpush1.bf16.msra.mxu0 %v1584
    %1831 = vmatprep.subr.bf16.mxu0 %v1579
    %1832 = vmatpush1.bf16.msra.mxu0 %v1578
    %1833 = vmatprep.subr.bf16.mxu0 %v1573
    %1834 = vmatpush1.bf16.msra.mxu0 %v1572
    %1835 = vmatprep.subr.bf16.mxu0 0
    %1836 = vmatpush2.bf16.msra.mxu0 0
    %1837 = vmatprep.subr.bf16.mxu0 0
    %1838 = vmatpush2.bf16.msra.mxu0 0
    %1839 = vmatprep.subr.bf16.mxu0 0
    %1840 = vmatpush2.bf16.msra.mxu0 0
    %1841 = vmatprep.subr.bf16.mxu0 0
    %1842 = vmatpush2.bf16.msra.mxu0 0
    %1843 = vmatprep.subr.bf16.mxu0 0
    %1844 = vmatpush2.bf16.msra.mxu0 0
    %1845 = vmatprep.subr.bf16.mxu0 0
    %1846 = vmatpush2.bf16.msra.mxu0 0
    %1847 = vmatprep.subr.bf16.mxu0 0
    %1848 = vmatpush2.bf16.msra.mxu0 0
    %1849 = vmatprep.subr.bf16.mxu0 0
    %1850 = vmatpush2.bf16.msra.mxu0 0
    %1851 = vmatprep.mubr.bf16.mxu0 0
    %1852 = vmatmul.mubr.bf16.gmra.mxu0 %v1818
    %v1853 = vpop.f32.mrf.mxu0
    %v1854 = vadd.f32 0.0, %v1853
    %v1855 = vpop.f32.mrf.mxu0
    %v1856 = vadd.f32 0.0, %v1855
    %v1857 = vpop.f32.mrf.mxu0
    %v1858 = vpop.f32.mrf.mxu0
    %1859 = vdwg.mxu0
    %1860 = vmatprep.subr.bf16.mxu0 %v1617
    %1861 = vmatpush1.bf16.msra.mxu0 %v1616
    %1862 = vmatprep.subr.bf16.mxu0 %v1611
    %1863 = vmatpush1.bf16.msra.mxu0 %v1610
    %1864 = vmatprep.subr.bf16.mxu0 %v1605
    %1865 = vmatpush1.bf16.msra.mxu0 %v1604
    %1866 = vmatprep.subr.bf16.mxu0 %v1599
    %1867 = vmatpush1.bf16.msra.mxu0 %v1598
    %1868 = vmatprep.subr.bf16.mxu0 %v1593
    %1869 = vmatpush1.bf16.msra.mxu0 %v1592
    %1870 = vmatprep.subr.bf16.mxu0 %v1587
    %1871 = vmatpush1.bf16.msra.mxu0 %v1586
    %1872 = vmatprep.subr.bf16.mxu0 %v1581
    %1873 = vmatpush1.bf16.msra.mxu0 %v1580
    %1874 = vmatprep.subr.bf16.mxu0 %v1575
    %1875 = vmatpush1.bf16.msra.mxu0 %v1574
    %1876 = vmatprep.subr.bf16.mxu0 0
    %1877 = vmatpush2.bf16.msra.mxu0 0
    %1878 = vmatprep.subr.bf16.mxu0 0
    %1879 = vmatpush2.bf16.msra.mxu0 0
    %1880 = vmatprep.subr.bf16.mxu0 0
    %1881 = vmatpush2.bf16.msra.mxu0 0
    %1882 = vmatprep.subr.bf16.mxu0 0
    %1883 = vmatpush2.bf16.msra.mxu0 0
    %1884 = vmatprep.subr.bf16.mxu0 0
    %1885 = vmatpush2.bf16.msra.mxu0 0
    %1886 = vmatprep.subr.bf16.mxu0 0
    %1887 = vmatpush2.bf16.msra.mxu0 0
    %1888 = vmatprep.subr.bf16.mxu0 0
    %1889 = vmatpush2.bf16.msra.mxu0 0
    %1890 = vmatprep.subr.bf16.mxu0 0
    %1891 = vmatpush2.bf16.msra.mxu0 0
    %1892 = vmatprep.mubr.bf16.mxu0 0
    %1893 = vmatmul.mubr.bf16.gmra.mxu0 %v1818
    %v1894 = vpop.f32.mrf.mxu0
    %v1895 = vadd.f32 0.0, %v1894
    %v1896 = vpop.f32.mrf.mxu0
    %v1897 = vadd.f32 0.0, %v1896
    %v1898 = vpop.f32.mrf.mxu0
    %v1899 = vpop.f32.mrf.mxu0
    %1900 = vdwg.mxu0
    %1901 = vmatprep.subr.bf16.mxu0 %v1619
    %1902 = vmatpush1.bf16.msra.mxu0 %v1618
    %1903 = vmatprep.subr.bf16.mxu0 %v1613
    %1904 = vmatpush1.bf16.msra.mxu0 %v1612
    %1905 = vmatprep.subr.bf16.mxu0 %v1607
    %1906 = vmatpush1.bf16.msra.mxu0 %v1606
    %1907 = vmatprep.subr.bf16.mxu0 %v1601
    %1908 = vmatpush1.bf16.msra.mxu0 %v1600
    %1909 = vmatprep.subr.bf16.mxu0 %v1595
    %1910 = vmatpush1.bf16.msra.mxu0 %v1594
    %1911 = vmatprep.subr.bf16.mxu0 %v1589
    %1912 = vmatpush1.bf16.msra.mxu0 %v1588
    %1913 = vmatprep.subr.bf16.mxu0 %v1583
    %1914 = vmatpush1.bf16.msra.mxu0 %v1582
    %1915 = vmatprep.subr.bf16.mxu0 %v1577
    %1916 = vmatpush1.bf16.msra.mxu0 %v1576
    %1917 = vmatprep.subr.bf16.mxu0 0
    %1918 = vmatpush2.bf16.msra.mxu0 0
    %1919 = vmatprep.subr.bf16.mxu0 0
    %1920 = vmatpush2.bf16.msra.mxu0 0
    %1921 = vmatprep.subr.bf16.mxu0 0
    %1922 = vmatpush2.bf16.msra.mxu0 0
    %1923 = vmatprep.subr.bf16.mxu0 0
    %1924 = vmatpush2.bf16.msra.mxu0 0
    %1925 = vmatprep.subr.bf16.mxu0 0
    %1926 = vmatpush2.bf16.msra.mxu0 0
    %1927 = vmatprep.subr.bf16.mxu0 0
    %1928 = vmatpush2.bf16.msra.mxu0 0
    %1929 = vmatprep.subr.bf16.mxu0 0
    %1930 = vmatpush2.bf16.msra.mxu0 0
    %1931 = vmatprep.subr.bf16.mxu0 0
    %1932 = vmatpush2.bf16.msra.mxu0 0
    %1933 = vmatprep.mubr.bf16.mxu0 0
    %1934 = vmatmul.mubr.bf16.gmra.mxu0 %v1818
    %v1935 = vpop.f32.mrf.mxu0
    %v1936 = vadd.f32 0.0, %v1935
    %v1937 = vpop.f32.mrf.mxu0
    %v1938 = vadd.f32 0.0, %v1937
    %v1939 = vpop.f32.mrf.mxu0
    %v1940 = vpop.f32.mrf.mxu0
    %1941 = vdwg.mxu0
    %v1942 = vadd.f32 %v1854, %v167
    %v1943 = vadd.f32 %v1856, %v171
    %v1944 = vadd.f32 %v1895, %v175
    %v1945 = vadd.f32 %v1942, %v1897
    %v1946 = vxor.u32 %v1945, 2147483648
    %v1947 = vmul.f32 %v1946, 1.442695
    %v1948 = vpow.pop %v1947
    %v1949 = vadd.f32 %v1948, 1.0
    %v1950 = vrcp.pop %v1949
    %v1951 = vmul.f32 1.0, %v1950
    %v1952 = vadd.f32 %v1943, %v1936
    %v1953 = vxor.u32 %v1952, 2147483648
    %v1954 = vmul.f32 %v1953, 1.442695
    %v1955 = vpow.pop %v1954
    %v1956 = vadd.f32 %v1955, 1.0
    %v1957 = vrcp.pop %v1956
    %v1958 = vmul.f32 1.0, %v1957
    %v1959 = vadd.f32 %v1938, %v160
    %v1960 = vmul.f32 %v1951, %v1959
    %v1961 = vadd.f32 %v1944, %v1960
    %v1962 = vtanh.pop %v1961
    %v1963 = vsub.f32 1.0, %v1958
    %v1964 = vmul.f32 %v1963, %v1962
    %v1965 = vmul.f32 %v1958, %v1815
    %v1966 = vadd.f32 %v1964, %v1965
    %s1967 = scalar_lea.vmem [#allocation3], 16
    %1968 = vst [vmem:[%s1967] sm:$0xff] %v1966
    %v1969 = vpack.c.bf16 %v1966, %v1966
    %1970 = vmatprep.subr.bf16.mxu0 %v1615
    %1971 = vmatpush1.bf16.msra.mxu0 %v1614
    %1972 = vmatprep.subr.bf16.mxu0 %v1609
    %1973 = vmatpush1.bf16.msra.mxu0 %v1608
    %1974 = vmatprep.subr.bf16.mxu0 %v1603
    %1975 = vmatpush1.bf16.msra.mxu0 %v1602
    %1976 = vmatprep.subr.bf16.mxu0 %v1597
    %1977 = vmatpush1.bf16.msra.mxu0 %v1596
    %1978 = vmatprep.subr.bf16.mxu0 %v1591
    %1979 = vmatpush1.bf16.msra.mxu0 %v1590
    %1980 = vmatprep.subr.bf16.mxu0 %v1585
    %1981 = vmatpush1.bf16.msra.mxu0 %v1584
    %1982 = vmatprep.subr.bf16.mxu0 %v1579
    %1983 = vmatpush1.bf16.msra.mxu0 %v1578
    %1984 = vmatprep.subr.bf16.mxu0 %v1573
    %1985 = vmatpush1.bf16.msra.mxu0 %v1572
    %1986 = vmatprep.subr.bf16.mxu0 0
    %1987 = vmatpush2.bf16.msra.mxu0 0
    %1988 = vmatprep.subr.bf16.mxu0 0
    %1989 = vmatpush2.bf16.msra.mxu0 0
    %1990 = vmatprep.subr.bf16.mxu0 0
    %1991 = vmatpush2.bf16.msra.mxu0 0
    %1992 = vmatprep.subr.bf16.mxu0 0
    %1993 = vmatpush2.bf16.msra.mxu0 0
    %1994 = vmatprep.subr.bf16.mxu0 0
    %1995 = vmatpush2.bf16.msra.mxu0 0
    %1996 = vmatprep.subr.bf16.mxu0 0
    %1997 = vmatpush2.bf16.msra.mxu0 0
    %1998 = vmatprep.subr.bf16.mxu0 0
    %1999 = vmatpush2.bf16.msra.mxu0 0
    %2000 = vmatprep.subr.bf16.mxu0 0
    %2001 = vmatpush2.bf16.msra.mxu0 0
    %2002 = vmatprep.mubr.bf16.mxu0 0
    %2003 = vmatmul.mubr.bf16.gmra.mxu0 %v1969
    %v2004 = vpop.f32.mrf.mxu0
    %v2005 = vadd.f32 0.0, %v2004
    %v2006 = vpop.f32.mrf.mxu0
    %v2007 = vadd.f32 0.0, %v2006
    %v2008 = vpop.f32.mrf.mxu0
    %v2009 = vpop.f32.mrf.mxu0
    %2010 = vdwg.mxu0
    %2011 = vmatprep.subr.bf16.mxu0 %v1617
    %2012 = vmatpush1.bf16.msra.mxu0 %v1616
    %2013 = vmatprep.subr.bf16.mxu0 %v1611
    %2014 = vmatpush1.bf16.msra.mxu0 %v1610
    %2015 = vmatprep.subr.bf16.mxu0 %v1605
    %2016 = vmatpush1.bf16.msra.mxu0 %v1604
    %2017 = vmatprep.subr.bf16.mxu0 %v1599
    %2018 = vmatpush1.bf16.msra.mxu0 %v1598
    %2019 = vmatprep.subr.bf16.mxu0 %v1593
    %2020 = vmatpush1.bf16.msra.mxu0 %v1592
    %2021 = vmatprep.subr.bf16.mxu0 %v1587
    %2022 = vmatpush1.bf16.msra.mxu0 %v1586
    %2023 = vmatprep.subr.bf16.mxu0 %v1581
    %2024 = vmatpush1.bf16.msra.mxu0 %v1580
    %2025 = vmatprep.subr.bf16.mxu0 %v1575
    %2026 = vmatpush1.bf16.msra.mxu0 %v1574
    %2027 = vmatprep.subr.bf16.mxu0 0
    %2028 = vmatpush2.bf16.msra.mxu0 0
    %2029 = vmatprep.subr.bf16.mxu0 0
    %2030 = vmatpush2.bf16.msra.mxu0 0
    %2031 = vmatprep.subr.bf16.mxu0 0
    %2032 = vmatpush2.bf16.msra.mxu0 0
    %2033 = vmatprep.subr.bf16.mxu0 0
    %2034 = vmatpush2.bf16.msra.mxu0 0
    %2035 = vmatprep.subr.bf16.mxu0 0
    %2036 = vmatpush2.bf16.msra.mxu0 0
    %2037 = vmatprep.subr.bf16.mxu0 0
    %2038 = vmatpush2.bf16.msra.mxu0 0
    %2039 = vmatprep.subr.bf16.mxu0 0
    %2040 = vmatpush2.bf16.msra.mxu0 0
    %2041 = vmatprep.subr.bf16.mxu0 0
    %2042 = vmatpush2.bf16.msra.mxu0 0
    %2043 = vmatprep.mubr.bf16.mxu0 0
    %2044 = vmatmul.mubr.bf16.gmra.mxu0 %v1969
    %v2045 = vpop.f32.mrf.mxu0
    %v2046 = vadd.f32 0.0, %v2045
    %v2047 = vpop.f32.mrf.mxu0
    %v2048 = vadd.f32 0.0, %v2047
    %v2049 = vpop.f32.mrf.mxu0
    %v2050 = vpop.f32.mrf.mxu0
    %2051 = vdwg.mxu0
    %2052 = vmatprep.subr.bf16.mxu0 %v1619
    %2053 = vmatpush1.bf16.msra.mxu0 %v1618
    %2054 = vmatprep.subr.bf16.mxu0 %v1613
    %2055 = vmatpush1.bf16.msra.mxu0 %v1612
    %2056 = vmatprep.subr.bf16.mxu0 %v1607
    %2057 = vmatpush1.bf16.msra.mxu0 %v1606
    %2058 = vmatprep.subr.bf16.mxu0 %v1601
    %2059 = vmatpush1.bf16.msra.mxu0 %v1600
    %2060 = vmatprep.subr.bf16.mxu0 %v1595
    %2061 = vmatpush1.bf16.msra.mxu0 %v1594
    %2062 = vmatprep.subr.bf16.mxu0 %v1589
    %2063 = vmatpush1.bf16.msra.mxu0 %v1588
    %2064 = vmatprep.subr.bf16.mxu0 %v1583
    %2065 = vmatpush1.bf16.msra.mxu0 %v1582
    %2066 = vmatprep.subr.bf16.mxu0 %v1577
    %2067 = vmatpush1.bf16.msra.mxu0 %v1576
    %2068 = vmatprep.subr.bf16.mxu0 0
    %2069 = vmatpush2.bf16.msra.mxu0 0
    %2070 = vmatprep.subr.bf16.mxu0 0
    %2071 = vmatpush2.bf16.msra.mxu0 0
    %2072 = vmatprep.subr.bf16.mxu0 0
    %2073 = vmatpush2.bf16.msra.mxu0 0
    %2074 = vmatprep.subr.bf16.mxu0 0
    %2075 = vmatpush2.bf16.msra.mxu0 0
    %2076 = vmatprep.subr.bf16.mxu0 0
    %2077 = vmatpush2.bf16.msra.mxu0 0
    %2078 = vmatprep.subr.bf16.mxu0 0
    %2079 = vmatpush2.bf16.msra.mxu0 0
    %2080 = vmatprep.subr.bf16.mxu0 0
    %2081 = vmatpush2.bf16.msra.mxu0 0
    %2082 = vmatprep.subr.bf16.mxu0 0
    %2083 = vmatpush2.bf16.msra.mxu0 0
    %2084 = vmatprep.mubr.bf16.mxu0 0
    %2085 = vmatmul.mubr.bf16.gmra.mxu0 %v1969
    %v2086 = vpop.f32.mrf.mxu0
    %v2087 = vadd.f32 0.0, %v2086
    %v2088 = vpop.f32.mrf.mxu0
    %v2089 = vadd.f32 0.0, %v2088
    %v2090 = vpop.f32.mrf.mxu0
    %v2091 = vpop.f32.mrf.mxu0
    %2092 = vdwg.mxu0
    %v2093 = vadd.f32 %v2005, %v167
    %v2094 = vadd.f32 %v2007, %v171
    %v2095 = vadd.f32 %v2046, %v175
    %v2096 = vadd.f32 %v2093, %v2048
    %v2097 = vxor.u32 %v2096, 2147483648
    %v2098 = vmul.f32 %v2097, 1.442695
    %v2099 = vpow.pop %v2098
    %v2100 = vadd.f32 %v2099, 1.0
    %v2101 = vrcp.pop %v2100
    %v2102 = vmul.f32 1.0, %v2101
    %v2103 = vadd.f32 %v2094, %v2087
    %v2104 = vxor.u32 %v2103, 2147483648
    %v2105 = vmul.f32 %v2104, 1.442695
    %v2106 = vpow.pop %v2105
    %v2107 = vadd.f32 %v2106, 1.0
    %v2108 = vrcp.pop %v2107
    %v2109 = vmul.f32 1.0, %v2108
    %v2110 = vadd.f32 %v2089, %v160
    %v2111 = vmul.f32 %v2102, %v2110
    %v2112 = vadd.f32 %v2095, %v2111
    %v2113 = vtanh.pop %v2112
    %v2114 = vsub.f32 1.0, %v2109
    %v2115 = vmul.f32 %v2114, %v2113
    %v2116 = vmul.f32 %v2109, %v1966
    %v2117 = vadd.f32 %v2115, %v2116
    %s2118 = scalar_lea.vmem [#allocation3], 24
    %2119 = vst [vmem:[%s2118] sm:$0xff] %v2117
    %v2120 = vld [vmem:[#allocation3] sm:$0xff]
    %v2121 = vld [vmem:[#allocation3 + $0x8] sm:$0xff]
    %v2122 = vld [vmem:[#allocation3 + $0x10] sm:$0xff]
    %v2123 = vld [vmem:[#allocation3 + $0x18] sm:$0xff]
    %v2124 = vpack.c.bf16 %v2121, %v2120
    %v2125 = vpack.c.bf16 %v2123, %v2122
    %v2126 = vld [vmem:[#allocation9] sm:$0xf]
    %v2127 = vld [vmem:[#allocation9 + $0x4] sm:$0xf]
    %v2128 = vld [vmem:[#allocation9 + $0x8] sm:$0xf]
    %v2129 = vld [vmem:[#allocation9 + $0xc] sm:$0xf]
    %v2130 = vld [vmem:[#allocation9 + $0x10] sm:$0xf]
    %v2131 = vld [vmem:[#allocation9 + $0x14] sm:$0xf]
    %v2132 = vld [vmem:[#allocation9 + $0x18] sm:$0xf]
    %v2133 = vld [vmem:[#allocation9 + $0x1c] sm:$0xf]
    %v2134 = vld [vmem:[#allocation9 + $0x20] sm:$0xf]
    %v2135 = vld [vmem:[#allocation9 + $0x24] sm:$0xf]
    %v2136 = vld [vmem:[#allocation9 + $0x28] sm:$0xf]
    %v2137 = vld [vmem:[#allocation9 + $0x2c] sm:$0xf]
    %v2138 = vld [vmem:[#allocation9 + $0x30] sm:$0xf]
    %v2139 = vld [vmem:[#allocation9 + $0x34] sm:$0xf]
    %v2140 = vld [vmem:[#allocation9 + $0x38] sm:$0xf]
    %v2141 = vld [vmem:[#allocation9 + $0x3c] sm:$0xf]
    %v2142 = vld [vmem:[%s8] sm:$0x1]
    %v2144 = vlaneseq
    %v2145 = vshrl.u32 %v2144, 7
    %v2146 = vsub.s32 0, %v2145
    %v2147 = vrot.slane %v2142, %v2146
    %v2165 = vunpack.c.l.b16 %v2126
    %v2166 = vunpack.c.l.b16 %v2127
    %v2167 = vunpack.c.l.b16 %v2128
    %v2168 = vunpack.c.l.b16 %v2129
    %v2169 = vunpack.c.l.b16 %v2130
    %v2170 = vunpack.c.l.b16 %v2131
    %v2171 = vunpack.c.l.b16 %v2132
    %v2172 = vunpack.c.l.b16 %v2133
    %v2173 = vunpack.c.l.b16 %v2134
    %v2174 = vunpack.c.l.b16 %v2135
    %v2175 = vunpack.c.l.b16 %v2136
    %v2176 = vunpack.c.l.b16 %v2137
    %v2177 = vunpack.c.l.b16 %v2138
    %v2178 = vunpack.c.l.b16 %v2139
    %v2179 = vunpack.c.l.b16 %v2140
    %v2180 = vunpack.c.l.b16 %v2141
    %v2181 = vpack.c.b16 %v2166, %v2165
    %v2182 = vpack.c.b16 %v2168, %v2167
    %v2183 = vpack.c.b16 %v2170, %v2169
    %v2184 = vpack.c.b16 %v2172, %v2171
    %v2185 = vpack.c.b16 %v2174, %v2173
    %v2186 = vpack.c.b16 %v2176, %v2175
    %v2187 = vpack.c.b16 %v2178, %v2177
    %v2188 = vpack.c.b16 %v2180, %v2179
    %2197 = vmatprep.subr.bf16.mxu0 0
    %2198 = vmatpush1.bf16.msra.mxu0 %v2188
    %2199 = vmatprep.subr.bf16.mxu0 0
    %2200 = vmatpush1.bf16.msra.mxu0 %v2187
    %2201 = vmatprep.subr.bf16.mxu0 0
    %2202 = vmatpush1.bf16.msra.mxu0 %v2186
    %2203 = vmatprep.subr.bf16.mxu0 0
    %2204 = vmatpush1.bf16.msra.mxu0 %v2185
    %2205 = vmatprep.subr.bf16.mxu0 0
    %2206 = vmatpush1.bf16.msra.mxu0 %v2184
    %2207 = vmatprep.subr.bf16.mxu0 0
    %2208 = vmatpush1.bf16.msra.mxu0 %v2183
    %2209 = vmatprep.subr.bf16.mxu0 0
    %2210 = vmatpush1.bf16.msra.mxu0 %v2182
    %2211 = vmatprep.subr.bf16.mxu0 0
    %2212 = vmatpush1.bf16.msra.mxu0 %v2181
    %2213 = vmatprep.subr.bf16.mxu0 0
    %2214 = vmatpush2.bf16.msra.mxu0 0
    %2215 = vmatprep.subr.bf16.mxu0 0
    %2216 = vmatpush2.bf16.msra.mxu0 0
    %2217 = vmatprep.subr.bf16.mxu0 0
    %2218 = vmatpush2.bf16.msra.mxu0 0
    %2219 = vmatprep.subr.bf16.mxu0 0
    %2220 = vmatpush2.bf16.msra.mxu0 0
    %2221 = vmatprep.subr.bf16.mxu0 0
    %2222 = vmatpush2.bf16.msra.mxu0 0
    %2223 = vmatprep.subr.bf16.mxu0 0
    %2224 = vmatpush2.bf16.msra.mxu0 0
    %2225 = vmatprep.subr.bf16.mxu0 0
    %2226 = vmatpush2.bf16.msra.mxu0 0
    %2227 = vmatprep.subr.bf16.mxu0 0
    %2228 = vmatpush2.bf16.msra.mxu0 0
    %2229 = vmatprep.mubr.bf16.mxu0 0
    %2230 = vmatmul.mubr.bf16.gmra.mxu0 %v2124
    %v2231 = vpop.f32.mrf.mxu0
    %v2232 = vadd.f32 %v2147, %v2231
    %v2233 = vpop.f32.mrf.mxu0
    %v2234 = vpop.f32.mrf.mxu0
    %v2235 = vadd.f32 %v2147, %v2234
    %v2236 = vpop.f32.mrf.mxu0
    %2237 = vmatprep.mubr.bf16.mxu0 0
    %2238 = vmatmul.mubr.bf16.gmra.mxu0 %v2125
    %v2239 = vpop.f32.mrf.mxu0
    %v2240 = vadd.f32 %v2147, %v2239
    %v2241 = vpop.f32.mrf.mxu0
    %v2242 = vpop.f32.mrf.mxu0
    %v2243 = vadd.f32 %v2147, %v2242
    %v2244 = vpop.f32.mrf.mxu0
    %2245 = vdwg.mxu0
    %2246 = vst [vmem:[#allocation10] sm:$0xff] %v2232
    %2247 = vst [vmem:[#allocation10 + $0x8] sm:$0xff] %v2235
    %2248 = vst [vmem:[#allocation10 + $0x10] sm:$0xff] %v2240
    %2249 = vst [vmem:[#allocation10 + $0x18] sm:$0xff] %v2243
    // Predicated region
    $region50: #{tpu_custom_call.1} parent=1 // pred_check
      _
    $region51: #{tpu_custom_call.1} parent=1 // pred_check_branch
      %2251 = sbr.rel (0) target = $region53
    $region52: #{tpu_custom_call.1} parent=1 // pred_region
      %s2253 = ssub.s32 512, 512
      %2254 = vsyncadd [#allocation6], %s2253
      %s2255 = sshll.u32 [#allocation10], 4
      %s2256 = int_to_ptr.vmem [resolvable:$true] %s2255
      %2261 = dma.vmem_to_hbm [thread:$0]  %s2256, 512, %s9, [#allocation6], 128, 128, 8
    $region53: #{tpu_custom_call.1} parent=1 // pred_fallthru
      _
    // Predicated region
    $region54: #{tpu_custom_call.1} parent=1 // pred_check
      _
    $region55: #{tpu_custom_call.1} parent=1 // pred_check_branch
      %2263 = sbr.rel (0) target = $region57
    $region56: #{tpu_custom_call.1} parent=1 // pred_region
      %2264 = dma.done [#allocation6], 512
    $region57: #{tpu_custom_call.1} parent=1 // pred_fallthru
      _
    %2265 = vsyncpa [#allocation5], 1
    %2266 = vsyncpa [#allocation8], 1
    %2267 = vsyncpa [#allocation6], 1

</llo_original>
